<compile_context>
chip_gen: v7x
topology: tpu7x:2x2x1
jax: 0.10.0
libtpu: 0.0.40
codegen_flags: <defaults>
</compile_context>

<pallas_src>
import functools

import jax
import jax.numpy as jnp
from jax.experimental import pallas as pl
from jax.experimental.pallas import tpu as pltpu

KSIZE = 7
PAD = (KSIZE - 1) // 2


def spatial_gate_kernel(w_ref, bn_ref, x_ref, o_ref, pad_ref, *, H, W):
    """One grid step processes `Nb` batch elements on the flat (C, H*W) view.

    w_ref  : SMEM (2*7*7,)  flattened conv weight (in-ch, kh, kw), f32
    bn_ref : SMEM (2,)      (eff_scale, eff_shift) folded eval-mode BN, f32
    x_ref  : VMEM (Nb, C, H*W)  lane-dense input block, native dtype
    o_ref  : VMEM (Nb, C, H*W)  lane-dense output block, native dtype
    pad_ref: VMEM (2, Nb, H*W + 2*(PAD*W + PAD)) f32 zero-padded flat pooled maps
    """
    Nb, _, HW = x_ref.shape
    lpad = PAD * W + PAD  # leading/trailing zero-pad length on the flat axis

    # --- ChannelPool: max / mean over C (f32 accumulation, lane-dense) -------
    # Two cheap VMEM reads; the big block value is NOT kept live across the
    # conv section (keeps vreg/VMEM pressure low so batch_block can grow).
    ch_max = jnp.max(x_ref[...], axis=1).astype(jnp.float32)        # (Nb, HW)
    ch_mean = jnp.mean(x_ref[...].astype(jnp.float32), axis=1)      # (Nb, HW)

    # --- zero-padded flat pooled maps ----------------------------------------
    # Only the two edge regions need zeroing (interior is fully overwritten).
    # Done every step (not under program_id==0) so the kernel stays correct
    # when the "parallel" batch axis is sharded across TensorCores.
    pad_ref[:, :, :lpad] = jnp.zeros((2, Nb, lpad), jnp.float32)
    pad_ref[:, :, lpad + HW:] = jnp.zeros((2, Nb, lpad), jnp.float32)
    pad_ref[0, :, lpad:lpad + HW] = ch_max
    pad_ref[1, :, lpad:lpad + HW] = ch_mean

    # Column index of every flat spatial position (masks taps whose flat shift
    # would wrap across a row boundary in the W direction).
    col = jax.lax.broadcasted_iota(jnp.int32, (Nb, HW), 1) % W

    # --- 7x7 conv (2 -> 1 channel, stride 1, no bias), fully unrolled --------
    # Tap (kh, kw) on the flat padded map is the static slice starting at
    # kh*W + kw; rows outside the image read the zero padding automatically,
    # columns outside the image are removed by the per-kw mask.
    acc = jnp.zeros((Nb, HW), jnp.float32)
    for kw in range(KSIZE):
        acc_kw = jnp.zeros((Nb, HW), jnp.float32)
        for c in range(2):
            for kh in range(KSIZE):
                start = kh * W + kw
                wv = w_ref[c * KSIZE * KSIZE + kh * KSIZE + kw]
                acc_kw = acc_kw + wv * pad_ref[c, :, start:start + HW]
        if kw == PAD:
            acc = acc + acc_kw                        # centre column: no mask
        else:
            mask = (col >= PAD - kw) & (col < W + PAD - kw)
            acc = acc + jnp.where(mask, acc_kw, 0.0)

    # --- BatchNorm (eval mode, folded affine) + sigmoid gate ------------------
    y = acc * bn_ref[0] + bn_ref[1]
    # exp and approx-reciprocal both land on the EUP slot (frees VALU slots).
    gate = pl.reciprocal(1.0 + jnp.exp(-y), approx=True)            # (Nb, HW)

    # --- gate the input: re-read x from VMEM, lane-dense unmasked store -------
    o_ref[...] = (x_ref[...].astype(jnp.float32)
                  * gate[:, None, :]).astype(o_ref.dtype)


def _pick_batch_block(N, per_elem_bytes, vmem_budget, target_steps=8):
    """Largest divisor of N whose block fits the VMEM budget, keeping enough
    grid steps for pipelining (>= ~4 per TensorCore on v7x)."""
    max_block = max(1, int(vmem_budget // max(1, per_elem_bytes)))
    max_block = min(max_block, max(1, N // min(target_steps, N)))
    best = 1
    for d in range(1, N + 1):
        if N % d == 0 and d <= max_block:
            best = d
    return best


def spatial_gate(x, conv_w, bn_gamma, bn_beta, bn_mean, bn_var,
                 eps=1e-5, batch_block=None, alias_input=False):
    N, C, H, W = x.shape
    HW = H * W
    out_dtype = x.dtype
    itemsize = jnp.dtype(out_dtype).itemsize

    # Fold eval-mode BatchNorm2d(1) into an affine (scale, shift) pair.
    eff_scale = bn_gamma / jnp.sqrt(bn_var + eps)
    eff_shift = bn_beta - bn_mean * eff_scale
    bn_params = jnp.concatenate(
        [jnp.ravel(eff_scale), jnp.ravel(eff_shift)]).astype(jnp.float32)  # (2,)
    w_flat = conv_w.reshape(-1).astype(jnp.float32)                        # (98,)

    lpad = PAD * W + PAD
    pad_flat = HW + 2 * lpad

    # Generation-aware VMEM budget (~78% of physical: ~50 MiB on v7x,
    # ~100 MiB on v5e/v6e), with a v7x-safe fallback if the query fails.
    try:
        vmem_cap = int(pltpu.get_tpu_info().vmem_capacity_bytes)
    except Exception:
        vmem_cap = 64 * 2**20
    vmem_budget = int(vmem_cap * 0.78)

    # Bytes resident per batch element: in + out blocks (double-buffered each)
    # in native dtype, plus the f32 padded pooled-map scratch.
    per_elem = 2 * 2 * C * HW * itemsize + 2 * pad_flat * 4

    if batch_block is None:
        batch_block = _pick_batch_block(N, per_elem, vmem_budget)
    grid = (N // batch_block,)

    need = batch_block * per_elem + (2 << 20)           # + Mosaic scratch slack
    vmem_limit = int(min(vmem_budget, max(need, 16 * 2**20)))

    # Lane-dense layout for the dominant tensors: last dim = H*W (>= 128 dense),
    # kept in the input's native dtype (no full-array f32 cast pass).
    x_flat = x.reshape(N, C, HW)

    out_flat = pl.pallas_call(
        functools.partial(spatial_gate_kernel, H=H, W=W),
        out_shape=jax.ShapeDtypeStruct((N, C, HW), out_dtype),
        grid=grid,
        in_specs=[
            pl.BlockSpec(memory_space=pltpu.MemorySpace.SMEM),        # conv w
            pl.BlockSpec(memory_space=pltpu.MemorySpace.SMEM),        # BN affine
            pl.BlockSpec((batch_block, C, HW), lambda n: (n, 0, 0)),  # x
        ],
        out_specs=pl.BlockSpec((batch_block, C, HW), lambda n: (n, 0, 0)),
        scratch_shapes=[
            pltpu.VMEM((2, batch_block, pad_flat), jnp.float32),
        ],
        # Optional: alias x to the output (identical index maps, same dtype).
        # Off by default: only worthwhile when the caller donates x's buffer.
        input_output_aliases=({2: 0} if alias_input else {}),
        compiler_params=pltpu.CompilerParams(
            dimension_semantics=("parallel",),
            vmem_limit_bytes=vmem_limit,
        ),
    )(w_flat, bn_params, x_flat)

    return out_flat.reshape(N, C, H, W)


def spatial_gate_ref(x, conv_w, gamma, beta, mean, var, eps=1e-5):
    """Pure-JAX reference (mirrors the PyTorch forward with eval-mode BN)."""
    ch_max = jnp.max(x, axis=1, keepdims=True)
    ch_mean = jnp.mean(x, axis=1, keepdims=True)
    pooled = jnp.concatenate([ch_max, ch_mean], axis=1)          # (N, 2, H, W)
    conv = jax.lax.conv_general_dilated(
        pooled, conv_w, window_strides=(1, 1),
        padding=[(PAD, PAD), (PAD, PAD)],
        dimension_numbers=("NCHW", "OIHW", "NCHW"))              # (N, 1, H, W)
    y = (conv - mean) / jnp.sqrt(var + eps) * gamma + beta
    gate = jax.nn.sigmoid(y)
    return x * gate


if __name__ == "__main__":
    key = jax.random.PRNGKey(0)
    kx, kw = jax.random.split(key)

    N, C, H, W = 2, 4, 16, 16
    x = jax.random.normal(kx, (N, C, H, W), dtype=jnp.float32)

    # Deterministic parameter init (synthetic, not a checkpoint load).
    conv_w = jax.random.normal(kw, (1, 2, KSIZE, KSIZE), dtype=jnp.float32) * (
        1.0 / (2 * KSIZE * KSIZE) ** 0.5)
    gamma = jnp.float32(1.2)
    beta = jnp.float32(-0.05)
    running_mean = jnp.float32(0.1)
    running_var = jnp.float32(1.5)

    out = spatial_gate(x, conv_w, gamma, beta, running_mean, running_var)
    out = jax.block_until_ready(out)

    ref = spatial_gate_ref(x, conv_w, gamma, beta, running_mean, running_var)
    assert out.shape == x.shape and out.dtype == x.dtype
    max_err = float(jnp.max(jnp.abs(out - ref)))
    # Tolerance accounts for the EUP approximate reciprocal in the sigmoid gate.
    assert max_err < 5e-3, f"max_err={max_err}"

    print("KERNEL_OK")
</pallas_src>

<mosaic_0001>
module attributes {stable_mosaic.version = 11 : i64} {
  func.func @spatial_gate_kernel(%arg0: i32, %arg1: memref<98xf32, #tpu.memory_space<smem>>, %arg2: memref<2xf32, #tpu.memory_space<smem>>, %arg3: memref<1x4x256xf32, #tpu.memory_space<vmem>>, %arg4: memref<1x4x256xf32, #tpu.memory_space<vmem>>, %arg5: memref<2x1x358xf32, #tpu.memory_space<vmem>>) attributes {dimension_semantics = [#tpu.dimension_semantics<parallel>], iteration_bounds = array<i64: 2>, scalar_prefetch = 0 : i64, scratch_operands = 1 : i64, tpu.core_type = #tpu.core_type<tc>, window_params = [{transform_indices = @transform_0, window_bounds = array<i64: 98>}, {transform_indices = @transform_1, window_bounds = array<i64: 2>}, {transform_indices = @transform_2, window_bounds = array<i64: 1, 4, 256>}, {transform_indices = @transform_3, window_bounds = array<i64: 1, 4, 256>}]} {
    %c0 = arith.constant 0 : index
    %c0_0 = arith.constant 0 : index
    %c0_1 = arith.constant 0 : index
    %0 = vector.load %arg3[%c0, %c0_0, %c0_1] : memref<1x4x256xf32, #tpu.memory_space<vmem>>, vector<1x4x256xf32>
    %cst = arith.constant dense<0xFF800000> : vector<1x256xf32>
    %1 = vector.multi_reduction <maximumf>, %0, %cst [1] : vector<1x4x256xf32> to vector<1x256xf32>
    %c0_2 = arith.constant 0 : index
    %c0_3 = arith.constant 0 : index
    %c0_4 = arith.constant 0 : index
    %2 = vector.load %arg3[%c0_2, %c0_3, %c0_4] : memref<1x4x256xf32, #tpu.memory_space<vmem>>, vector<1x4x256xf32>
    %cst_5 = arith.constant dense<0.000000e+00> : vector<1x256xf32>
    %3 = vector.multi_reduction <add>, %2, %cst_5 [1] : vector<1x4x256xf32> to vector<1x256xf32>
    %cst_6 = arith.constant 4.000000e+00 : f32
    %4 = vector.broadcast %cst_6 : f32 to vector<1x256xf32>
    %5 = arith.divf %3, %4 : vector<1x256xf32>
    %cst_7 = arith.constant 0.000000e+00 : f32
    %6 = vector.broadcast %cst_7 : f32 to vector<2x1x51xf32>
    %c0_8 = arith.constant 0 : index
    %c0_9 = arith.constant 0 : index
    %c0_10 = arith.constant 0 : index
    %7 = vector.load %arg5[%c0_8, %c0_9, %c0_10] : memref<2x1x358xf32, #tpu.memory_space<vmem>>, vector<2x1x51xf32>
    tpu.vector_store %arg5[%c0_8, %c0_9, %c0_10], %6 {strides = array<i32>} : memref<2x1x358xf32, #tpu.memory_space<vmem>>, vector<2x1x51xf32>,
    %cst_11 = arith.constant 0.000000e+00 : f32
    %8 = vector.broadcast %cst_11 : f32 to vector<2x1x51xf32>
    %c0_12 = arith.constant 0 : index
    %c0_13 = arith.constant 0 : index
    %c307 = arith.constant 307 : index
    %9 = vector.load %arg5[%c0_12, %c0_13, %c307] : memref<2x1x358xf32, #tpu.memory_space<vmem>>, vector<2x1x51xf32>
    tpu.vector_store %arg5[%c0_12, %c0_13, %c307], %8 {strides = array<i32>} : memref<2x1x358xf32, #tpu.memory_space<vmem>>, vector<2x1x51xf32>,
    %c0_14 = arith.constant 0 : index
    %c0_15 = arith.constant 0 : index
    %c51 = arith.constant 51 : index
    %10 = vector.load %arg5[%c0_14, %c0_15, %c51] : memref<2x1x358xf32, #tpu.memory_space<vmem>>, vector<1x1x256xf32>
    %11 = vector.shape_cast %10 : vector<1x1x256xf32> to vector<1x256xf32>
    %12 = vector.shape_cast %1 : vector<1x256xf32> to vector<1x1x256xf32>
    tpu.vector_store %arg5[%c0_14, %c0_15, %c51], %12 {strides = array<i32>} : memref<2x1x358xf32, #tpu.memory_space<vmem>>, vector<1x1x256xf32>,
    %c1 = arith.constant 1 : index
    %c0_16 = arith.constant 0 : index
    %c51_17 = arith.constant 51 : index
    %13 = vector.load %arg5[%c1, %c0_16, %c51_17] : memref<2x1x358xf32, #tpu.memory_space<vmem>>, vector<1x1x256xf32>
    %14 = vector.shape_cast %13 : vector<1x1x256xf32> to vector<1x256xf32>
    %15 = vector.shape_cast %5 : vector<1x256xf32> to vector<1x1x256xf32>
    tpu.vector_store %arg5[%c1, %c0_16, %c51_17], %15 {strides = array<i32>} : memref<2x1x358xf32, #tpu.memory_space<vmem>>, vector<1x1x256xf32>,
    %16 = tpu.iota {dimensions = array<i32: 1>} : vector<1x256xi32>
    %c16_i32 = arith.constant 16 : i32
    %c0_i32 = arith.constant 0 : i32
    %17 = arith.cmpi eq, %c16_i32, %c0_i32 : i32
    %c1_i32 = arith.constant 1 : i32
    %18 = arith.select %17, %c1_i32, %c16_i32 : i32
    %19 = vector.broadcast %18 : i32 to vector<1x256xi32>
    %20 = arith.remsi %16, %19 : vector<1x256xi32>
    %c0_i32_18 = arith.constant 0 : i32
    %21 = vector.broadcast %c0_i32_18 : i32 to vector<1x256xi32>
    %22 = arith.cmpi ne, %20, %21 : vector<1x256xi32>
    %c0_i32_19 = arith.constant 0 : i32
    %23 = vector.broadcast %c0_i32_19 : i32 to vector<1x256xi32>
    %24 = arith.cmpi slt, %20, %23 : vector<1x256xi32>
    %c0_i32_20 = arith.constant 0 : i32
    %25 = arith.cmpi slt, %18, %c0_i32_20 : i32
    %26 = vector.broadcast %25 : i1 to vector<1x256xi1>
    %27 = vector.broadcast %26 : vector<1x256xi1> to vector<1x256xi1>
    %28 = arith.xori %24, %27 : vector<1x256xi1>
    %29 = arith.andi %28, %22 : vector<1x256xi1>
    %30 = vector.broadcast %18 : i32 to vector<1x256xi32>
    %31 = arith.addi %20, %30 : vector<1x256xi32>
    %32 = arith.select %29, %31, %20 : vector<1x256xi1>, vector<1x256xi32>
    %cst_21 = arith.constant 0.000000e+00 : f32
    %33 = vector.broadcast %cst_21 : f32 to vector<1x256xf32>
    %cst_22 = arith.constant 0.000000e+00 : f32
    %34 = vector.broadcast %cst_22 : f32 to vector<1x256xf32>
    %c0_23 = arith.constant 0 : index
    %35 = memref.load %arg1[%c0_23] : memref<98xf32, #tpu.memory_space<smem>>
    %c0_24 = arith.constant 0 : index
    %c0_25 = arith.constant 0 : index
    %c0_26 = arith.constant 0 : index
    %36 = vector.load %arg5[%c0_24, %c0_25, %c0_26] : memref<2x1x358xf32, #tpu.memory_space<vmem>>, vector<1x1x256xf32>
    %37 = vector.shape_cast %36 : vector<1x1x256xf32> to vector<1x256xf32>
    %38 = vector.broadcast %35 : f32 to vector<1x256xf32>
    %39 = arith.mulf %38, %37 : vector<1x256xf32>
    %40 = arith.addf %34, %39 : vector<1x256xf32>
    %c7 = arith.constant 7 : index
    %41 = memref.load %arg1[%c7] : memref<98xf32, #tpu.memory_space<smem>>
    %c0_27 = arith.constant 0 : index
    %c0_28 = arith.constant 0 : index
    %c16 = arith.constant 16 : index
    %42 = vector.load %arg5[%c0_27, %c0_28, %c16] : memref<2x1x358xf32, #tpu.memory_space<vmem>>, vector<1x1x256xf32>
    %43 = vector.shape_cast %42 : vector<1x1x256xf32> to vector<1x256xf32>
    %44 = vector.broadcast %41 : f32 to vector<1x256xf32>
    %45 = arith.mulf %44, %43 : vector<1x256xf32>
    %46 = arith.addf %40, %45 : vector<1x256xf32>
    %c14 = arith.constant 14 : index
    %47 = memref.load %arg1[%c14] : memref<98xf32, #tpu.memory_space<smem>>
    %c0_29 = arith.constant 0 : index
    %c0_30 = arith.constant 0 : index
    %c32 = arith.constant 32 : index
    %48 = vector.load %arg5[%c0_29, %c0_30, %c32] : memref<2x1x358xf32, #tpu.memory_space<vmem>>, vector<1x1x256xf32>
    %49 = vector.shape_cast %48 : vector<1x1x256xf32> to vector<1x256xf32>
    %50 = vector.broadcast %47 : f32 to vector<1x256xf32>
    %51 = arith.mulf %50, %49 : vector<1x256xf32>
    %52 = arith.addf %46, %51 : vector<1x256xf32>
    %c21 = arith.constant 21 : index
    %53 = memref.load %arg1[%c21] : memref<98xf32, #tpu.memory_space<smem>>
    %c0_31 = arith.constant 0 : index
    %c0_32 = arith.constant 0 : index
    %c48 = arith.constant 48 : index
    %54 = vector.load %arg5[%c0_31, %c0_32, %c48] : memref<2x1x358xf32, #tpu.memory_space<vmem>>, vector<1x1x256xf32>
    %55 = vector.shape_cast %54 : vector<1x1x256xf32> to vector<1x256xf32>
    %56 = vector.broadcast %53 : f32 to vector<1x256xf32>
    %57 = arith.mulf %56, %55 : vector<1x256xf32>
    %58 = arith.addf %52, %57 : vector<1x256xf32>
    %c28 = arith.constant 28 : index
    %59 = memref.load %arg1[%c28] : memref<98xf32, #tpu.memory_space<smem>>
    %c0_33 = arith.constant 0 : index
    %c0_34 = arith.constant 0 : index
    %c64 = arith.constant 64 : index
    %60 = vector.load %arg5[%c0_33, %c0_34, %c64] : memref<2x1x358xf32, #tpu.memory_space<vmem>>, vector<1x1x256xf32>
    %61 = vector.shape_cast %60 : vector<1x1x256xf32> to vector<1x256xf32>
    %62 = vector.broadcast %59 : f32 to vector<1x256xf32>
    %63 = arith.mulf %62, %61 : vector<1x256xf32>
    %64 = arith.addf %58, %63 : vector<1x256xf32>
    %c35 = arith.constant 35 : index
    %65 = memref.load %arg1[%c35] : memref<98xf32, #tpu.memory_space<smem>>
    %c0_35 = arith.constant 0 : index
    %c0_36 = arith.constant 0 : index
    %c80 = arith.constant 80 : index
    %66 = vector.load %arg5[%c0_35, %c0_36, %c80] : memref<2x1x358xf32, #tpu.memory_space<vmem>>, vector<1x1x256xf32>
    %67 = vector.shape_cast %66 : vector<1x1x256xf32> to vector<1x256xf32>
    %68 = vector.broadcast %65 : f32 to vector<1x256xf32>
    %69 = arith.mulf %68, %67 : vector<1x256xf32>
    %70 = arith.addf %64, %69 : vector<1x256xf32>
    %c42 = arith.constant 42 : index
    %71 = memref.load %arg1[%c42] : memref<98xf32, #tpu.memory_space<smem>>
    %c0_37 = arith.constant 0 : index
    %c0_38 = arith.constant 0 : index
    %c96 = arith.constant 96 : index
    %72 = vector.load %arg5[%c0_37, %c0_38, %c96] : memref<2x1x358xf32, #tpu.memory_space<vmem>>, vector<1x1x256xf32>
    %73 = vector.shape_cast %72 : vector<1x1x256xf32> to vector<1x256xf32>
    %74 = vector.broadcast %71 : f32 to vector<1x256xf32>
    %75 = arith.mulf %74, %73 : vector<1x256xf32>
    %76 = arith.addf %70, %75 : vector<1x256xf32>
    %c49 = arith.constant 49 : index
    %77 = memref.load %arg1[%c49] : memref<98xf32, #tpu.memory_space<smem>>
    %c1_39 = arith.constant 1 : index
    %c0_40 = arith.constant 0 : index
    %c0_41 = arith.constant 0 : index
    %78 = vector.load %arg5[%c1_39, %c0_40, %c0_41] : memref<2x1x358xf32, #tpu.memory_space<vmem>>, vector<1x1x256xf32>
    %79 = vector.shape_cast %78 : vector<1x1x256xf32> to vector<1x256xf32>
    %80 = vector.broadcast %77 : f32 to vector<1x256xf32>
    %81 = arith.mulf %80, %79 : vector<1x256xf32>
    %82 = arith.addf %76, %81 : vector<1x256xf32>
    %c56 = arith.constant 56 : index
    %83 = memref.load %arg1[%c56] : memref<98xf32, #tpu.memory_space<smem>>
    %c1_42 = arith.constant 1 : index
    %c0_43 = arith.constant 0 : index
    %c16_44 = arith.constant 16 : index
    %84 = vector.load %arg5[%c1_42, %c0_43, %c16_44] : memref<2x1x358xf32, #tpu.memory_space<vmem>>, vector<1x1x256xf32>
    %85 = vector.shape_cast %84 : vector<1x1x256xf32> to vector<1x256xf32>
    %86 = vector.broadcast %83 : f32 to vector<1x256xf32>
    %87 = arith.mulf %86, %85 : vector<1x256xf32>
    %88 = arith.addf %82, %87 : vector<1x256xf32>
    %c63 = arith.constant 63 : index
    %89 = memref.load %arg1[%c63] : memref<98xf32, #tpu.memory_space<smem>>
    %c1_45 = arith.constant 1 : index
    %c0_46 = arith.constant 0 : index
    %c32_47 = arith.constant 32 : index
    %90 = vector.load %arg5[%c1_45, %c0_46, %c32_47] : memref<2x1x358xf32, #tpu.memory_space<vmem>>, vector<1x1x256xf32>
    %91 = vector.shape_cast %90 : vector<1x1x256xf32> to vector<1x256xf32>
    %92 = vector.broadcast %89 : f32 to vector<1x256xf32>
    %93 = arith.mulf %92, %91 : vector<1x256xf32>
    %94 = arith.addf %88, %93 : vector<1x256xf32>
    %c70 = arith.constant 70 : index
    %95 = memref.load %arg1[%c70] : memref<98xf32, #tpu.memory_space<smem>>
    %c1_48 = arith.constant 1 : index
    %c0_49 = arith.constant 0 : index
    %c48_50 = arith.constant 48 : index
    %96 = vector.load %arg5[%c1_48, %c0_49, %c48_50] : memref<2x1x358xf32, #tpu.memory_space<vmem>>, vector<1x1x256xf32>
    %97 = vector.shape_cast %96 : vector<1x1x256xf32> to vector<1x256xf32>
    %98 = vector.broadcast %95 : f32 to vector<1x256xf32>
    %99 = arith.mulf %98, %97 : vector<1x256xf32>
    %100 = arith.addf %94, %99 : vector<1x256xf32>
    %c77 = arith.constant 77 : index
    %101 = memref.load %arg1[%c77] : memref<98xf32, #tpu.memory_space<smem>>
    %c1_51 = arith.constant 1 : index
    %c0_52 = arith.constant 0 : index
    %c64_53 = arith.constant 64 : index
    %102 = vector.load %arg5[%c1_51, %c0_52, %c64_53] : memref<2x1x358xf32, #tpu.memory_space<vmem>>, vector<1x1x256xf32>
    %103 = vector.shape_cast %102 : vector<1x1x256xf32> to vector<1x256xf32>
    %104 = vector.broadcast %101 : f32 to vector<1x256xf32>
    %105 = arith.mulf %104, %103 : vector<1x256xf32>
    %106 = arith.addf %100, %105 : vector<1x256xf32>
    %c84 = arith.constant 84 : index
    %107 = memref.load %arg1[%c84] : memref<98xf32, #tpu.memory_space<smem>>
    %c1_54 = arith.constant 1 : index
    %c0_55 = arith.constant 0 : index
    %c80_56 = arith.constant 80 : index
    %108 = vector.load %arg5[%c1_54, %c0_55, %c80_56] : memref<2x1x358xf32, #tpu.memory_space<vmem>>, vector<1x1x256xf32>
    %109 = vector.shape_cast %108 : vector<1x1x256xf32> to vector<1x256xf32>
    %110 = vector.broadcast %107 : f32 to vector<1x256xf32>
    %111 = arith.mulf %110, %109 : vector<1x256xf32>
    %112 = arith.addf %106, %111 : vector<1x256xf32>
    %c91 = arith.constant 91 : index
    %113 = memref.load %arg1[%c91] : memref<98xf32, #tpu.memory_space<smem>>
    %c1_57 = arith.constant 1 : index
    %c0_58 = arith.constant 0 : index
    %c96_59 = arith.constant 96 : index
    %114 = vector.load %arg5[%c1_57, %c0_58, %c96_59] : memref<2x1x358xf32, #tpu.memory_space<vmem>>, vector<1x1x256xf32>
    %115 = vector.shape_cast %114 : vector<1x1x256xf32> to vector<1x256xf32>
    %116 = vector.broadcast %113 : f32 to vector<1x256xf32>
    %117 = arith.mulf %116, %115 : vector<1x256xf32>
    %118 = arith.addf %112, %117 : vector<1x256xf32>
    %c3_i32 = arith.constant 3 : i32
    %119 = vector.broadcast %c3_i32 : i32 to vector<1x256xi32>
    %120 = arith.cmpi sge, %32, %119 : vector<1x256xi32>
    %c19_i32 = arith.constant 19 : i32
    %121 = vector.broadcast %c19_i32 : i32 to vector<1x256xi32>
    %122 = arith.cmpi slt, %32, %121 : vector<1x256xi32>
    %123 = arith.andi %120, %122 : vector<1x256xi1>
    %cst_60 = arith.constant 0.000000e+00 : f32
    %124 = vector.broadcast %cst_60 : f32 to vector<1x256xf32>
    %125 = arith.select %123, %118, %124 : vector<1x256xi1>, vector<1x256xf32>
    %126 = arith.addf %33, %125 : vector<1x256xf32>
    %cst_61 = arith.constant 0.000000e+00 : f32
    %127 = vector.broadcast %cst_61 : f32 to vector<1x256xf32>
    %c1_62 = arith.constant 1 : index
    %128 = memref.load %arg1[%c1_62] : memref<98xf32, #tpu.memory_space<smem>>
    %c0_63 = arith.constant 0 : index
    %c0_64 = arith.constant 0 : index
    %c1_65 = arith.constant 1 : index
    %129 = vector.load %arg5[%c0_63, %c0_64, %c1_65] : memref<2x1x358xf32, #tpu.memory_space<vmem>>, vector<1x1x256xf32>
    %130 = vector.shape_cast %129 : vector<1x1x256xf32> to vector<1x256xf32>
    %131 = vector.broadcast %128 : f32 to vector<1x256xf32>
    %132 = arith.mulf %131, %130 : vector<1x256xf32>
    %133 = arith.addf %127, %132 : vector<1x256xf32>
    %c8 = arith.constant 8 : index
    %134 = memref.load %arg1[%c8] : memref<98xf32, #tpu.memory_space<smem>>
    %c0_66 = arith.constant 0 : index
    %c0_67 = arith.constant 0 : index
    %c17 = arith.constant 17 : index
    %135 = vector.load %arg5[%c0_66, %c0_67, %c17] : memref<2x1x358xf32, #tpu.memory_space<vmem>>, vector<1x1x256xf32>
    %136 = vector.shape_cast %135 : vector<1x1x256xf32> to vector<1x256xf32>
    %137 = vector.broadcast %134 : f32 to vector<1x256xf32>
    %138 = arith.mulf %137, %136 : vector<1x256xf32>
    %139 = arith.addf %133, %138 : vector<1x256xf32>
    %c15 = arith.constant 15 : index
    %140 = memref.load %arg1[%c15] : memref<98xf32, #tpu.memory_space<smem>>
    %c0_68 = arith.constant 0 : index
    %c0_69 = arith.constant 0 : index
    %c33 = arith.constant 33 : index
    %141 = vector.load %arg5[%c0_68, %c0_69, %c33] : memref<2x1x358xf32, #tpu.memory_space<vmem>>, vector<1x1x256xf32>
    %142 = vector.shape_cast %141 : vector<1x1x256xf32> to vector<1x256xf32>
    %143 = vector.broadcast %140 : f32 to vector<1x256xf32>
    %144 = arith.mulf %143, %142 : vector<1x256xf32>
    %145 = arith.addf %139, %144 : vector<1x256xf32>
    %c22 = arith.constant 22 : index
    %146 = memref.load %arg1[%c22] : memref<98xf32, #tpu.memory_space<smem>>
    %c0_70 = arith.constant 0 : index
    %c0_71 = arith.constant 0 : index
    %c49_72 = arith.constant 49 : index
    %147 = vector.load %arg5[%c0_70, %c0_71, %c49_72] : memref<2x1x358xf32, #tpu.memory_space<vmem>>, vector<1x1x256xf32>
    %148 = vector.shape_cast %147 : vector<1x1x256xf32> to vector<1x256xf32>
    %149 = vector.broadcast %146 : f32 to vector<1x256xf32>
    %150 = arith.mulf %149, %148 : vector<1x256xf32>
    %151 = arith.addf %145, %150 : vector<1x256xf32>
    %c29 = arith.constant 29 : index
    %152 = memref.load %arg1[%c29] : memref<98xf32, #tpu.memory_space<smem>>
    %c0_73 = arith.constant 0 : index
    %c0_74 = arith.constant 0 : index
    %c65 = arith.constant 65 : index
    %153 = vector.load %arg5[%c0_73, %c0_74, %c65] : memref<2x1x358xf32, #tpu.memory_space<vmem>>, vector<1x1x256xf32>
    %154 = vector.shape_cast %153 : vector<1x1x256xf32> to vector<1x256xf32>
    %155 = vector.broadcast %152 : f32 to vector<1x256xf32>
    %156 = arith.mulf %155, %154 : vector<1x256xf32>
    %157 = arith.addf %151, %156 : vector<1x256xf32>
    %c36 = arith.constant 36 : index
    %158 = memref.load %arg1[%c36] : memref<98xf32, #tpu.memory_space<smem>>
    %c0_75 = arith.constant 0 : index
    %c0_76 = arith.constant 0 : index
    %c81 = arith.constant 81 : index
    %159 = vector.load %arg5[%c0_75, %c0_76, %c81] : memref<2x1x358xf32, #tpu.memory_space<vmem>>, vector<1x1x256xf32>
    %160 = vector.shape_cast %159 : vector<1x1x256xf32> to vector<1x256xf32>
    %161 = vector.broadcast %158 : f32 to vector<1x256xf32>
    %162 = arith.mulf %161, %160 : vector<1x256xf32>
    %163 = arith.addf %157, %162 : vector<1x256xf32>
    %c43 = arith.constant 43 : index
    %164 = memref.load %arg1[%c43] : memref<98xf32, #tpu.memory_space<smem>>
    %c0_77 = arith.constant 0 : index
    %c0_78 = arith.constant 0 : index
    %c97 = arith.constant 97 : index
    %165 = vector.load %arg5[%c0_77, %c0_78, %c97] : memref<2x1x358xf32, #tpu.memory_space<vmem>>, vector<1x1x256xf32>
    %166 = vector.shape_cast %165 : vector<1x1x256xf32> to vector<1x256xf32>
    %167 = vector.broadcast %164 : f32 to vector<1x256xf32>
    %168 = arith.mulf %167, %166 : vector<1x256xf32>
    %169 = arith.addf %163, %168 : vector<1x256xf32>
    %c50 = arith.constant 50 : index
    %170 = memref.load %arg1[%c50] : memref<98xf32, #tpu.memory_space<smem>>
    %c1_79 = arith.constant 1 : index
    %c0_80 = arith.constant 0 : index
    %c1_81 = arith.constant 1 : index
    %171 = vector.load %arg5[%c1_79, %c0_80, %c1_81] : memref<2x1x358xf32, #tpu.memory_space<vmem>>, vector<1x1x256xf32>
    %172 = vector.shape_cast %171 : vector<1x1x256xf32> to vector<1x256xf32>
    %173 = vector.broadcast %170 : f32 to vector<1x256xf32>
    %174 = arith.mulf %173, %172 : vector<1x256xf32>
    %175 = arith.addf %169, %174 : vector<1x256xf32>
    %c57 = arith.constant 57 : index
    %176 = memref.load %arg1[%c57] : memref<98xf32, #tpu.memory_space<smem>>
    %c1_82 = arith.constant 1 : index
    %c0_83 = arith.constant 0 : index
    %c17_84 = arith.constant 17 : index
    %177 = vector.load %arg5[%c1_82, %c0_83, %c17_84] : memref<2x1x358xf32, #tpu.memory_space<vmem>>, vector<1x1x256xf32>
    %178 = vector.shape_cast %177 : vector<1x1x256xf32> to vector<1x256xf32>
    %179 = vector.broadcast %176 : f32 to vector<1x256xf32>
    %180 = arith.mulf %179, %178 : vector<1x256xf32>
    %181 = arith.addf %175, %180 : vector<1x256xf32>
    %c64_85 = arith.constant 64 : index
    %182 = memref.load %arg1[%c64_85] : memref<98xf32, #tpu.memory_space<smem>>
    %c1_86 = arith.constant 1 : index
    %c0_87 = arith.constant 0 : index
    %c33_88 = arith.constant 33 : index
    %183 = vector.load %arg5[%c1_86, %c0_87, %c33_88] : memref<2x1x358xf32, #tpu.memory_space<vmem>>, vector<1x1x256xf32>
    %184 = vector.shape_cast %183 : vector<1x1x256xf32> to vector<1x256xf32>
    %185 = vector.broadcast %182 : f32 to vector<1x256xf32>
    %186 = arith.mulf %185, %184 : vector<1x256xf32>
    %187 = arith.addf %181, %186 : vector<1x256xf32>
    %c71 = arith.constant 71 : index
    %188 = memref.load %arg1[%c71] : memref<98xf32, #tpu.memory_space<smem>>
    %c1_89 = arith.constant 1 : index
    %c0_90 = arith.constant 0 : index
    %c49_91 = arith.constant 49 : index
    %189 = vector.load %arg5[%c1_89, %c0_90, %c49_91] : memref<2x1x358xf32, #tpu.memory_space<vmem>>, vector<1x1x256xf32>
    %190 = vector.shape_cast %189 : vector<1x1x256xf32> to vector<1x256xf32>
    %191 = vector.broadcast %188 : f32 to vector<1x256xf32>
    %192 = arith.mulf %191, %190 : vector<1x256xf32>
    %193 = arith.addf %187, %192 : vector<1x256xf32>
    %c78 = arith.constant 78 : index
    %194 = memref.load %arg1[%c78] : memref<98xf32, #tpu.memory_space<smem>>
    %c1_92 = arith.constant 1 : index
    %c0_93 = arith.constant 0 : index
    %c65_94 = arith.constant 65 : index
    %195 = vector.load %arg5[%c1_92, %c0_93, %c65_94] : memref<2x1x358xf32, #tpu.memory_space<vmem>>, vector<1x1x256xf32>
    %196 = vector.shape_cast %195 : vector<1x1x256xf32> to vector<1x256xf32>
    %197 = vector.broadcast %194 : f32 to vector<1x256xf32>
    %198 = arith.mulf %197, %196 : vector<1x256xf32>
    %199 = arith.addf %193, %198 : vector<1x256xf32>
    %c85 = arith.constant 85 : index
    %200 = memref.load %arg1[%c85] : memref<98xf32, #tpu.memory_space<smem>>
    %c1_95 = arith.constant 1 : index
    %c0_96 = arith.constant 0 : index
    %c81_97 = arith.constant 81 : index
    %201 = vector.load %arg5[%c1_95, %c0_96, %c81_97] : memref<2x1x358xf32, #tpu.memory_space<vmem>>, vector<1x1x256xf32>
    %202 = vector.shape_cast %201 : vector<1x1x256xf32> to vector<1x256xf32>
    %203 = vector.broadcast %200 : f32 to vector<1x256xf32>
    %204 = arith.mulf %203, %202 : vector<1x256xf32>
    %205 = arith.addf %199, %204 : vector<1x256xf32>
    %c92 = arith.constant 92 : index
    %206 = memref.load %arg1[%c92] : memref<98xf32, #tpu.memory_space<smem>>
    %c1_98 = arith.constant 1 : index
    %c0_99 = arith.constant 0 : index
    %c97_100 = arith.constant 97 : index
    %207 = vector.load %arg5[%c1_98, %c0_99, %c97_100] : memref<2x1x358xf32, #tpu.memory_space<vmem>>, vector<1x1x256xf32>
    %208 = vector.shape_cast %207 : vector<1x1x256xf32> to vector<1x256xf32>
    %209 = vector.broadcast %206 : f32 to vector<1x256xf32>
    %210 = arith.mulf %209, %208 : vector<1x256xf32>
    %211 = arith.addf %205, %210 : vector<1x256xf32>
    %c2_i32 = arith.constant 2 : i32
    %212 = vector.broadcast %c2_i32 : i32 to vector<1x256xi32>
    %213 = arith.cmpi sge, %32, %212 : vector<1x256xi32>
    %c18_i32 = arith.constant 18 : i32
    %214 = vector.broadcast %c18_i32 : i32 to vector<1x256xi32>
    %215 = arith.cmpi slt, %32, %214 : vector<1x256xi32>
    %216 = arith.andi %213, %215 : vector<1x256xi1>
    %cst_101 = arith.constant 0.000000e+00 : f32
    %217 = vector.broadcast %cst_101 : f32 to vector<1x256xf32>
    %218 = arith.select %216, %211, %217 : vector<1x256xi1>, vector<1x256xf32>
    %219 = arith.addf %126, %218 : vector<1x256xf32>
    %cst_102 = arith.constant 0.000000e+00 : f32
    %220 = vector.broadcast %cst_102 : f32 to vector<1x256xf32>
    %c2 = arith.constant 2 : index
    %221 = memref.load %arg1[%c2] : memref<98xf32, #tpu.memory_space<smem>>
    %c0_103 = arith.constant 0 : index
    %c0_104 = arith.constant 0 : index
    %c2_105 = arith.constant 2 : index
    %222 = vector.load %arg5[%c0_103, %c0_104, %c2_105] : memref<2x1x358xf32, #tpu.memory_space<vmem>>, vector<1x1x256xf32>
    %223 = vector.shape_cast %222 : vector<1x1x256xf32> to vector<1x256xf32>
    %224 = vector.broadcast %221 : f32 to vector<1x256xf32>
    %225 = arith.mulf %224, %223 : vector<1x256xf32>
    %226 = arith.addf %220, %225 : vector<1x256xf32>
    %c9 = arith.constant 9 : index
    %227 = memref.load %arg1[%c9] : memref<98xf32, #tpu.memory_space<smem>>
    %c0_106 = arith.constant 0 : index
    %c0_107 = arith.constant 0 : index
    %c18 = arith.constant 18 : index
    %228 = vector.load %arg5[%c0_106, %c0_107, %c18] : memref<2x1x358xf32, #tpu.memory_space<vmem>>, vector<1x1x256xf32>
    %229 = vector.shape_cast %228 : vector<1x1x256xf32> to vector<1x256xf32>
    %230 = vector.broadcast %227 : f32 to vector<1x256xf32>
    %231 = arith.mulf %230, %229 : vector<1x256xf32>
    %232 = arith.addf %226, %231 : vector<1x256xf32>
    %c16_108 = arith.constant 16 : index
    %233 = memref.load %arg1[%c16_108] : memref<98xf32, #tpu.memory_space<smem>>
    %c0_109 = arith.constant 0 : index
    %c0_110 = arith.constant 0 : index
    %c34 = arith.constant 34 : index
    %234 = vector.load %arg5[%c0_109, %c0_110, %c34] : memref<2x1x358xf32, #tpu.memory_space<vmem>>, vector<1x1x256xf32>
    %235 = vector.shape_cast %234 : vector<1x1x256xf32> to vector<1x256xf32>
    %236 = vector.broadcast %233 : f32 to vector<1x256xf32>
    %237 = arith.mulf %236, %235 : vector<1x256xf32>
    %238 = arith.addf %232, %237 : vector<1x256xf32>
    %c23 = arith.constant 23 : index
    %239 = memref.load %arg1[%c23] : memref<98xf32, #tpu.memory_space<smem>>
    %c0_111 = arith.constant 0 : index
    %c0_112 = arith.constant 0 : index
    %c50_113 = arith.constant 50 : index
    %240 = vector.load %arg5[%c0_111, %c0_112, %c50_113] : memref<2x1x358xf32, #tpu.memory_space<vmem>>, vector<1x1x256xf32>
    %241 = vector.shape_cast %240 : vector<1x1x256xf32> to vector<1x256xf32>
    %242 = vector.broadcast %239 : f32 to vector<1x256xf32>
    %243 = arith.mulf %242, %241 : vector<1x256xf32>
    %244 = arith.addf %238, %243 : vector<1x256xf32>
    %c30 = arith.constant 30 : index
    %245 = memref.load %arg1[%c30] : memref<98xf32, #tpu.memory_space<smem>>
    %c0_114 = arith.constant 0 : index
    %c0_115 = arith.constant 0 : index
    %c66 = arith.constant 66 : index
    %246 = vector.load %arg5[%c0_114, %c0_115, %c66] : memref<2x1x358xf32, #tpu.memory_space<vmem>>, vector<1x1x256xf32>
    %247 = vector.shape_cast %246 : vector<1x1x256xf32> to vector<1x256xf32>
    %248 = vector.broadcast %245 : f32 to vector<1x256xf32>
    %249 = arith.mulf %248, %247 : vector<1x256xf32>
    %250 = arith.addf %244, %249 : vector<1x256xf32>
    %c37 = arith.constant 37 : index
    %251 = memref.load %arg1[%c37] : memref<98xf32, #tpu.memory_space<smem>>
    %c0_116 = arith.constant 0 : index
    %c0_117 = arith.constant 0 : index
    %c82 = arith.constant 82 : index
    %252 = vector.load %arg5[%c0_116, %c0_117, %c82] : memref<2x1x358xf32, #tpu.memory_space<vmem>>, vector<1x1x256xf32>
    %253 = vector.shape_cast %252 : vector<1x1x256xf32> to vector<1x256xf32>
    %254 = vector.broadcast %251 : f32 to vector<1x256xf32>
    %255 = arith.mulf %254, %253 : vector<1x256xf32>
    %256 = arith.addf %250, %255 : vector<1x256xf32>
    %c44 = arith.constant 44 : index
    %257 = memref.load %arg1[%c44] : memref<98xf32, #tpu.memory_space<smem>>
    %c0_118 = arith.constant 0 : index
    %c0_119 = arith.constant 0 : index
    %c98 = arith.constant 98 : index
    %258 = vector.load %arg5[%c0_118, %c0_119, %c98] : memref<2x1x358xf32, #tpu.memory_space<vmem>>, vector<1x1x256xf32>
    %259 = vector.shape_cast %258 : vector<1x1x256xf32> to vector<1x256xf32>
    %260 = vector.broadcast %257 : f32 to vector<1x256xf32>
    %261 = arith.mulf %260, %259 : vector<1x256xf32>
    %262 = arith.addf %256, %261 : vector<1x256xf32>
    %c51_120 = arith.constant 51 : index
    %263 = memref.load %arg1[%c51_120] : memref<98xf32, #tpu.memory_space<smem>>
    %c1_121 = arith.constant 1 : index
    %c0_122 = arith.constant 0 : index
    %c2_123 = arith.constant 2 : index
    %264 = vector.load %arg5[%c1_121, %c0_122, %c2_123] : memref<2x1x358xf32, #tpu.memory_space<vmem>>, vector<1x1x256xf32>
    %265 = vector.shape_cast %264 : vector<1x1x256xf32> to vector<1x256xf32>
    %266 = vector.broadcast %263 : f32 to vector<1x256xf32>
    %267 = arith.mulf %266, %265 : vector<1x256xf32>
    %268 = arith.addf %262, %267 : vector<1x256xf32>
    %c58 = arith.constant 58 : index
    %269 = memref.load %arg1[%c58] : memref<98xf32, #tpu.memory_space<smem>>
    %c1_124 = arith.constant 1 : index
    %c0_125 = arith.constant 0 : index
    %c18_126 = arith.constant 18 : index
    %270 = vector.load %arg5[%c1_124, %c0_125, %c18_126] : memref<2x1x358xf32, #tpu.memory_space<vmem>>, vector<1x1x256xf32>
    %271 = vector.shape_cast %270 : vector<1x1x256xf32> to vector<1x256xf32>
    %272 = vector.broadcast %269 : f32 to vector<1x256xf32>
    %273 = arith.mulf %272, %271 : vector<1x256xf32>
    %274 = arith.addf %268, %273 : vector<1x256xf32>
    %c65_127 = arith.constant 65 : index
    %275 = memref.load %arg1[%c65_127] : memref<98xf32, #tpu.memory_space<smem>>
    %c1_128 = arith.constant 1 : index
    %c0_129 = arith.constant 0 : index
    %c34_130 = arith.constant 34 : index
    %276 = vector.load %arg5[%c1_128, %c0_129, %c34_130] : memref<2x1x358xf32, #tpu.memory_space<vmem>>, vector<1x1x256xf32>
    %277 = vector.shape_cast %276 : vector<1x1x256xf32> to vector<1x256xf32>
    %278 = vector.broadcast %275 : f32 to vector<1x256xf32>
    %279 = arith.mulf %278, %277 : vector<1x256xf32>
    %280 = arith.addf %274, %279 : vector<1x256xf32>
    %c72 = arith.constant 72 : index
    %281 = memref.load %arg1[%c72] : memref<98xf32, #tpu.memory_space<smem>>
    %c1_131 = arith.constant 1 : index
    %c0_132 = arith.constant 0 : index
    %c50_133 = arith.constant 50 : index
    %282 = vector.load %arg5[%c1_131, %c0_132, %c50_133] : memref<2x1x358xf32, #tpu.memory_space<vmem>>, vector<1x1x256xf32>
    %283 = vector.shape_cast %282 : vector<1x1x256xf32> to vector<1x256xf32>
    %284 = vector.broadcast %281 : f32 to vector<1x256xf32>
    %285 = arith.mulf %284, %283 : vector<1x256xf32>
    %286 = arith.addf %280, %285 : vector<1x256xf32>
    %c79 = arith.constant 79 : index
    %287 = memref.load %arg1[%c79] : memref<98xf32, #tpu.memory_space<smem>>
    %c1_134 = arith.constant 1 : index
    %c0_135 = arith.constant 0 : index
    %c66_136 = arith.constant 66 : index
    %288 = vector.load %arg5[%c1_134, %c0_135, %c66_136] : memref<2x1x358xf32, #tpu.memory_space<vmem>>, vector<1x1x256xf32>
    %289 = vector.shape_cast %288 : vector<1x1x256xf32> to vector<1x256xf32>
    %290 = vector.broadcast %287 : f32 to vector<1x256xf32>
    %291 = arith.mulf %290, %289 : vector<1x256xf32>
    %292 = arith.addf %286, %291 : vector<1x256xf32>
    %c86 = arith.constant 86 : index
    %293 = memref.load %arg1[%c86] : memref<98xf32, #tpu.memory_space<smem>>
    %c1_137 = arith.constant 1 : index
    %c0_138 = arith.constant 0 : index
    %c82_139 = arith.constant 82 : index
    %294 = vector.load %arg5[%c1_137, %c0_138, %c82_139] : memref<2x1x358xf32, #tpu.memory_space<vmem>>, vector<1x1x256xf32>
    %295 = vector.shape_cast %294 : vector<1x1x256xf32> to vector<1x256xf32>
    %296 = vector.broadcast %293 : f32 to vector<1x256xf32>
    %297 = arith.mulf %296, %295 : vector<1x256xf32>
    %298 = arith.addf %292, %297 : vector<1x256xf32>
    %c93 = arith.constant 93 : index
    %299 = memref.load %arg1[%c93] : memref<98xf32, #tpu.memory_space<smem>>
    %c1_140 = arith.constant 1 : index
    %c0_141 = arith.constant 0 : index
    %c98_142 = arith.constant 98 : index
    %300 = vector.load %arg5[%c1_140, %c0_141, %c98_142] : memref<2x1x358xf32, #tpu.memory_space<vmem>>, vector<1x1x256xf32>
    %301 = vector.shape_cast %300 : vector<1x1x256xf32> to vector<1x256xf32>
    %302 = vector.broadcast %299 : f32 to vector<1x256xf32>
    %303 = arith.mulf %302, %301 : vector<1x256xf32>
    %304 = arith.addf %298, %303 : vector<1x256xf32>
    %c1_i32_143 = arith.constant 1 : i32
    %305 = vector.broadcast %c1_i32_143 : i32 to vector<1x256xi32>
    %306 = arith.cmpi sge, %32, %305 : vector<1x256xi32>
    %c17_i32 = arith.constant 17 : i32
    %307 = vector.broadcast %c17_i32 : i32 to vector<1x256xi32>
    %308 = arith.cmpi slt, %32, %307 : vector<1x256xi32>
    %309 = arith.andi %306, %308 : vector<1x256xi1>
    %cst_144 = arith.constant 0.000000e+00 : f32
    %310 = vector.broadcast %cst_144 : f32 to vector<1x256xf32>
    %311 = arith.select %309, %304, %310 : vector<1x256xi1>, vector<1x256xf32>
    %312 = arith.addf %219, %311 : vector<1x256xf32>
    %cst_145 = arith.constant 0.000000e+00 : f32
    %313 = vector.broadcast %cst_145 : f32 to vector<1x256xf32>
    %c3 = arith.constant 3 : index
    %314 = memref.load %arg1[%c3] : memref<98xf32, #tpu.memory_space<smem>>
    %c0_146 = arith.constant 0 : index
    %c0_147 = arith.constant 0 : index
    %c3_148 = arith.constant 3 : index
    %315 = vector.load %arg5[%c0_146, %c0_147, %c3_148] : memref<2x1x358xf32, #tpu.memory_space<vmem>>, vector<1x1x256xf32>
    %316 = vector.shape_cast %315 : vector<1x1x256xf32> to vector<1x256xf32>
    %317 = vector.broadcast %314 : f32 to vector<1x256xf32>
    %318 = arith.mulf %317, %316 : vector<1x256xf32>
    %319 = arith.addf %313, %318 : vector<1x256xf32>
    %c10 = arith.constant 10 : index
    %320 = memref.load %arg1[%c10] : memref<98xf32, #tpu.memory_space<smem>>
    %c0_149 = arith.constant 0 : index
    %c0_150 = arith.constant 0 : index
    %c19 = arith.constant 19 : index
    %321 = vector.load %arg5[%c0_149, %c0_150, %c19] : memref<2x1x358xf32, #tpu.memory_space<vmem>>, vector<1x1x256xf32>
    %322 = vector.shape_cast %321 : vector<1x1x256xf32> to vector<1x256xf32>
    %323 = vector.broadcast %320 : f32 to vector<1x256xf32>
    %324 = arith.mulf %323, %322 : vector<1x256xf32>
    %325 = arith.addf %319, %324 : vector<1x256xf32>
    %c17_151 = arith.constant 17 : index
    %326 = memref.load %arg1[%c17_151] : memref<98xf32, #tpu.memory_space<smem>>
    %c0_152 = arith.constant 0 : index
    %c0_153 = arith.constant 0 : index
    %c35_154 = arith.constant 35 : index
    %327 = vector.load %arg5[%c0_152, %c0_153, %c35_154] : memref<2x1x358xf32, #tpu.memory_space<vmem>>, vector<1x1x256xf32>
    %328 = vector.shape_cast %327 : vector<1x1x256xf32> to vector<1x256xf32>
    %329 = vector.broadcast %326 : f32 to vector<1x256xf32>
    %330 = arith.mulf %329, %328 : vector<1x256xf32>
    %331 = arith.addf %325, %330 : vector<1x256xf32>
    %c24 = arith.constant 24 : index
    %332 = memref.load %arg1[%c24] : memref<98xf32, #tpu.memory_space<smem>>
    %c0_155 = arith.constant 0 : index
    %c0_156 = arith.constant 0 : index
    %c51_157 = arith.constant 51 : index
    %333 = vector.load %arg5[%c0_155, %c0_156, %c51_157] : memref<2x1x358xf32, #tpu.memory_space<vmem>>, vector<1x1x256xf32>
    %334 = vector.shape_cast %333 : vector<1x1x256xf32> to vector<1x256xf32>
    %335 = vector.broadcast %332 : f32 to vector<1x256xf32>
    %336 = arith.mulf %335, %334 : vector<1x256xf32>
    %337 = arith.addf %331, %336 : vector<1x256xf32>
    %c31 = arith.constant 31 : index
    %338 = memref.load %arg1[%c31] : memref<98xf32, #tpu.memory_space<smem>>
    %c0_158 = arith.constant 0 : index
    %c0_159 = arith.constant 0 : index
    %c67 = arith.constant 67 : index
    %339 = vector.load %arg5[%c0_158, %c0_159, %c67] : memref<2x1x358xf32, #tpu.memory_space<vmem>>, vector<1x1x256xf32>
    %340 = vector.shape_cast %339 : vector<1x1x256xf32> to vector<1x256xf32>
    %341 = vector.broadcast %338 : f32 to vector<1x256xf32>
    %342 = arith.mulf %341, %340 : vector<1x256xf32>
    %343 = arith.addf %337, %342 : vector<1x256xf32>
    %c38 = arith.constant 38 : index
    %344 = memref.load %arg1[%c38] : memref<98xf32, #tpu.memory_space<smem>>
    %c0_160 = arith.constant 0 : index
    %c0_161 = arith.constant 0 : index
    %c83 = arith.constant 83 : index
    %345 = vector.load %arg5[%c0_160, %c0_161, %c83] : memref<2x1x358xf32, #tpu.memory_space<vmem>>, vector<1x1x256xf32>
    %346 = vector.shape_cast %345 : vector<1x1x256xf32> to vector<1x256xf32>
    %347 = vector.broadcast %344 : f32 to vector<1x256xf32>
    %348 = arith.mulf %347, %346 : vector<1x256xf32>
    %349 = arith.addf %343, %348 : vector<1x256xf32>
    %c45 = arith.constant 45 : index
    %350 = memref.load %arg1[%c45] : memref<98xf32, #tpu.memory_space<smem>>
    %c0_162 = arith.constant 0 : index
    %c0_163 = arith.constant 0 : index
    %c99 = arith.constant 99 : index
    %351 = vector.load %arg5[%c0_162, %c0_163, %c99] : memref<2x1x358xf32, #tpu.memory_space<vmem>>, vector<1x1x256xf32>
    %352 = vector.shape_cast %351 : vector<1x1x256xf32> to vector<1x256xf32>
    %353 = vector.broadcast %350 : f32 to vector<1x256xf32>
    %354 = arith.mulf %353, %352 : vector<1x256xf32>
    %355 = arith.addf %349, %354 : vector<1x256xf32>
    %c52 = arith.constant 52 : index
    %356 = memref.load %arg1[%c52] : memref<98xf32, #tpu.memory_space<smem>>
    %c1_164 = arith.constant 1 : index
    %c0_165 = arith.constant 0 : index
    %c3_166 = arith.constant 3 : index
    %357 = vector.load %arg5[%c1_164, %c0_165, %c3_166] : memref<2x1x358xf32, #tpu.memory_space<vmem>>, vector<1x1x256xf32>
    %358 = vector.shape_cast %357 : vector<1x1x256xf32> to vector<1x256xf32>
    %359 = vector.broadcast %356 : f32 to vector<1x256xf32>
    %360 = arith.mulf %359, %358 : vector<1x256xf32>
    %361 = arith.addf %355, %360 : vector<1x256xf32>
    %c59 = arith.constant 59 : index
    %362 = memref.load %arg1[%c59] : memref<98xf32, #tpu.memory_space<smem>>
    %c1_167 = arith.constant 1 : index
    %c0_168 = arith.constant 0 : index
    %c19_169 = arith.constant 19 : index
    %363 = vector.load %arg5[%c1_167, %c0_168, %c19_169] : memref<2x1x358xf32, #tpu.memory_space<vmem>>, vector<1x1x256xf32>
    %364 = vector.shape_cast %363 : vector<1x1x256xf32> to vector<1x256xf32>
    %365 = vector.broadcast %362 : f32 to vector<1x256xf32>
    %366 = arith.mulf %365, %364 : vector<1x256xf32>
    %367 = arith.addf %361, %366 : vector<1x256xf32>
    %c66_170 = arith.constant 66 : index
    %368 = memref.load %arg1[%c66_170] : memref<98xf32, #tpu.memory_space<smem>>
    %c1_171 = arith.constant 1 : index
    %c0_172 = arith.constant 0 : index
    %c35_173 = arith.constant 35 : index
    %369 = vector.load %arg5[%c1_171, %c0_172, %c35_173] : memref<2x1x358xf32, #tpu.memory_space<vmem>>, vector<1x1x256xf32>
    %370 = vector.shape_cast %369 : vector<1x1x256xf32> to vector<1x256xf32>
    %371 = vector.broadcast %368 : f32 to vector<1x256xf32>
    %372 = arith.mulf %371, %370 : vector<1x256xf32>
    %373 = arith.addf %367, %372 : vector<1x256xf32>
    %c73 = arith.constant 73 : index
    %374 = memref.load %arg1[%c73] : memref<98xf32, #tpu.memory_space<smem>>
    %c1_174 = arith.constant 1 : index
    %c0_175 = arith.constant 0 : index
    %c51_176 = arith.constant 51 : index
    %375 = vector.load %arg5[%c1_174, %c0_175, %c51_176] : memref<2x1x358xf32, #tpu.memory_space<vmem>>, vector<1x1x256xf32>
    %376 = vector.shape_cast %375 : vector<1x1x256xf32> to vector<1x256xf32>
    %377 = vector.broadcast %374 : f32 to vector<1x256xf32>
    %378 = arith.mulf %377, %376 : vector<1x256xf32>
    %379 = arith.addf %373, %378 : vector<1x256xf32>
    %c80_177 = arith.constant 80 : index
    %380 = memref.load %arg1[%c80_177] : memref<98xf32, #tpu.memory_space<smem>>
    %c1_178 = arith.constant 1 : index
    %c0_179 = arith.constant 0 : index
    %c67_180 = arith.constant 67 : index
    %381 = vector.load %arg5[%c1_178, %c0_179, %c67_180] : memref<2x1x358xf32, #tpu.memory_space<vmem>>, vector<1x1x256xf32>
    %382 = vector.shape_cast %381 : vector<1x1x256xf32> to vector<1x256xf32>
    %383 = vector.broadcast %380 : f32 to vector<1x256xf32>
    %384 = arith.mulf %383, %382 : vector<1x256xf32>
    %385 = arith.addf %379, %384 : vector<1x256xf32>
    %c87 = arith.constant 87 : index
    %386 = memref.load %arg1[%c87] : memref<98xf32, #tpu.memory_space<smem>>
    %c1_181 = arith.constant 1 : index
    %c0_182 = arith.constant 0 : index
    %c83_183 = arith.constant 83 : index
    %387 = vector.load %arg5[%c1_181, %c0_182, %c83_183] : memref<2x1x358xf32, #tpu.memory_space<vmem>>, vector<1x1x256xf32>
    %388 = vector.shape_cast %387 : vector<1x1x256xf32> to vector<1x256xf32>
    %389 = vector.broadcast %386 : f32 to vector<1x256xf32>
    %390 = arith.mulf %389, %388 : vector<1x256xf32>
    %391 = arith.addf %385, %390 : vector<1x256xf32>
    %c94 = arith.constant 94 : index
    %392 = memref.load %arg1[%c94] : memref<98xf32, #tpu.memory_space<smem>>
    %c1_184 = arith.constant 1 : index
    %c0_185 = arith.constant 0 : index
    %c99_186 = arith.constant 99 : index
    %393 = vector.load %arg5[%c1_184, %c0_185, %c99_186] : memref<2x1x358xf32, #tpu.memory_space<vmem>>, vector<1x1x256xf32>
    %394 = vector.shape_cast %393 : vector<1x1x256xf32> to vector<1x256xf32>
    %395 = vector.broadcast %392 : f32 to vector<1x256xf32>
    %396 = arith.mulf %395, %394 : vector<1x256xf32>
    %397 = arith.addf %391, %396 : vector<1x256xf32>
    %398 = arith.addf %312, %397 : vector<1x256xf32>
    %cst_187 = arith.constant 0.000000e+00 : f32
    %399 = vector.broadcast %cst_187 : f32 to vector<1x256xf32>
    %c4 = arith.constant 4 : index
    %400 = memref.load %arg1[%c4] : memref<98xf32, #tpu.memory_space<smem>>
    %c0_188 = arith.constant 0 : index
    %c0_189 = arith.constant 0 : index
    %c4_190 = arith.constant 4 : index
    %401 = vector.load %arg5[%c0_188, %c0_189, %c4_190] : memref<2x1x358xf32, #tpu.memory_space<vmem>>, vector<1x1x256xf32>
    %402 = vector.shape_cast %401 : vector<1x1x256xf32> to vector<1x256xf32>
    %403 = vector.broadcast %400 : f32 to vector<1x256xf32>
    %404 = arith.mulf %403, %402 : vector<1x256xf32>
    %405 = arith.addf %399, %404 : vector<1x256xf32>
    %c11 = arith.constant 11 : index
    %406 = memref.load %arg1[%c11] : memref<98xf32, #tpu.memory_space<smem>>
    %c0_191 = arith.constant 0 : index
    %c0_192 = arith.constant 0 : index
    %c20 = arith.constant 20 : index
    %407 = vector.load %arg5[%c0_191, %c0_192, %c20] : memref<2x1x358xf32, #tpu.memory_space<vmem>>, vector<1x1x256xf32>
    %408 = vector.shape_cast %407 : vector<1x1x256xf32> to vector<1x256xf32>
    %409 = vector.broadcast %406 : f32 to vector<1x256xf32>
    %410 = arith.mulf %409, %408 : vector<1x256xf32>
    %411 = arith.addf %405, %410 : vector<1x256xf32>
    %c18_193 = arith.constant 18 : index
    %412 = memref.load %arg1[%c18_193] : memref<98xf32, #tpu.memory_space<smem>>
    %c0_194 = arith.constant 0 : index
    %c0_195 = arith.constant 0 : index
    %c36_196 = arith.constant 36 : index
    %413 = vector.load %arg5[%c0_194, %c0_195, %c36_196] : memref<2x1x358xf32, #tpu.memory_space<vmem>>, vector<1x1x256xf32>
    %414 = vector.shape_cast %413 : vector<1x1x256xf32> to vector<1x256xf32>
    %415 = vector.broadcast %412 : f32 to vector<1x256xf32>
    %416 = arith.mulf %415, %414 : vector<1x256xf32>
    %417 = arith.addf %411, %416 : vector<1x256xf32>
    %c25 = arith.constant 25 : index
    %418 = memref.load %arg1[%c25] : memref<98xf32, #tpu.memory_space<smem>>
    %c0_197 = arith.constant 0 : index
    %c0_198 = arith.constant 0 : index
    %c52_199 = arith.constant 52 : index
    %419 = vector.load %arg5[%c0_197, %c0_198, %c52_199] : memref<2x1x358xf32, #tpu.memory_space<vmem>>, vector<1x1x256xf32>
    %420 = vector.shape_cast %419 : vector<1x1x256xf32> to vector<1x256xf32>
    %421 = vector.broadcast %418 : f32 to vector<1x256xf32>
    %422 = arith.mulf %421, %420 : vector<1x256xf32>
    %423 = arith.addf %417, %422 : vector<1x256xf32>
    %c32_200 = arith.constant 32 : index
    %424 = memref.load %arg1[%c32_200] : memref<98xf32, #tpu.memory_space<smem>>
    %c0_201 = arith.constant 0 : index
    %c0_202 = arith.constant 0 : index
    %c68 = arith.constant 68 : index
    %425 = vector.load %arg5[%c0_201, %c0_202, %c68] : memref<2x1x358xf32, #tpu.memory_space<vmem>>, vector<1x1x256xf32>
    %426 = vector.shape_cast %425 : vector<1x1x256xf32> to vector<1x256xf32>
    %427 = vector.broadcast %424 : f32 to vector<1x256xf32>
    %428 = arith.mulf %427, %426 : vector<1x256xf32>
    %429 = arith.addf %423, %428 : vector<1x256xf32>
    %c39 = arith.constant 39 : index
    %430 = memref.load %arg1[%c39] : memref<98xf32, #tpu.memory_space<smem>>
    %c0_203 = arith.constant 0 : index
    %c0_204 = arith.constant 0 : index
    %c84_205 = arith.constant 84 : index
    %431 = vector.load %arg5[%c0_203, %c0_204, %c84_205] : memref<2x1x358xf32, #tpu.memory_space<vmem>>, vector<1x1x256xf32>
    %432 = vector.shape_cast %431 : vector<1x1x256xf32> to vector<1x256xf32>
    %433 = vector.broadcast %430 : f32 to vector<1x256xf32>
    %434 = arith.mulf %433, %432 : vector<1x256xf32>
    %435 = arith.addf %429, %434 : vector<1x256xf32>
    %c46 = arith.constant 46 : index
    %436 = memref.load %arg1[%c46] : memref<98xf32, #tpu.memory_space<smem>>
    %c0_206 = arith.constant 0 : index
    %c0_207 = arith.constant 0 : index
    %c100 = arith.constant 100 : index
    %437 = vector.load %arg5[%c0_206, %c0_207, %c100] : memref<2x1x358xf32, #tpu.memory_space<vmem>>, vector<1x1x256xf32>
    %438 = vector.shape_cast %437 : vector<1x1x256xf32> to vector<1x256xf32>
    %439 = vector.broadcast %436 : f32 to vector<1x256xf32>
    %440 = arith.mulf %439, %438 : vector<1x256xf32>
    %441 = arith.addf %435, %440 : vector<1x256xf32>
    %c53 = arith.constant 53 : index
    %442 = memref.load %arg1[%c53] : memref<98xf32, #tpu.memory_space<smem>>
    %c1_208 = arith.constant 1 : index
    %c0_209 = arith.constant 0 : index
    %c4_210 = arith.constant 4 : index
    %443 = vector.load %arg5[%c1_208, %c0_209, %c4_210] : memref<2x1x358xf32, #tpu.memory_space<vmem>>, vector<1x1x256xf32>
    %444 = vector.shape_cast %443 : vector<1x1x256xf32> to vector<1x256xf32>
    %445 = vector.broadcast %442 : f32 to vector<1x256xf32>
    %446 = arith.mulf %445, %444 : vector<1x256xf32>
    %447 = arith.addf %441, %446 : vector<1x256xf32>
    %c60 = arith.constant 60 : index
    %448 = memref.load %arg1[%c60] : memref<98xf32, #tpu.memory_space<smem>>
    %c1_211 = arith.constant 1 : index
    %c0_212 = arith.constant 0 : index
    %c20_213 = arith.constant 20 : index
    %449 = vector.load %arg5[%c1_211, %c0_212, %c20_213] : memref<2x1x358xf32, #tpu.memory_space<vmem>>, vector<1x1x256xf32>
    %450 = vector.shape_cast %449 : vector<1x1x256xf32> to vector<1x256xf32>
    %451 = vector.broadcast %448 : f32 to vector<1x256xf32>
    %452 = arith.mulf %451, %450 : vector<1x256xf32>
    %453 = arith.addf %447, %452 : vector<1x256xf32>
    %c67_214 = arith.constant 67 : index
    %454 = memref.load %arg1[%c67_214] : memref<98xf32, #tpu.memory_space<smem>>
    %c1_215 = arith.constant 1 : index
    %c0_216 = arith.constant 0 : index
    %c36_217 = arith.constant 36 : index
    %455 = vector.load %arg5[%c1_215, %c0_216, %c36_217] : memref<2x1x358xf32, #tpu.memory_space<vmem>>, vector<1x1x256xf32>
    %456 = vector.shape_cast %455 : vector<1x1x256xf32> to vector<1x256xf32>
    %457 = vector.broadcast %454 : f32 to vector<1x256xf32>
    %458 = arith.mulf %457, %456 : vector<1x256xf32>
    %459 = arith.addf %453, %458 : vector<1x256xf32>
    %c74 = arith.constant 74 : index
    %460 = memref.load %arg1[%c74] : memref<98xf32, #tpu.memory_space<smem>>
    %c1_218 = arith.constant 1 : index
    %c0_219 = arith.constant 0 : index
    %c52_220 = arith.constant 52 : index
    %461 = vector.load %arg5[%c1_218, %c0_219, %c52_220] : memref<2x1x358xf32, #tpu.memory_space<vmem>>, vector<1x1x256xf32>
    %462 = vector.shape_cast %461 : vector<1x1x256xf32> to vector<1x256xf32>
    %463 = vector.broadcast %460 : f32 to vector<1x256xf32>
    %464 = arith.mulf %463, %462 : vector<1x256xf32>
    %465 = arith.addf %459, %464 : vector<1x256xf32>
    %c81_221 = arith.constant 81 : index
    %466 = memref.load %arg1[%c81_221] : memref<98xf32, #tpu.memory_space<smem>>
    %c1_222 = arith.constant 1 : index
    %c0_223 = arith.constant 0 : index
    %c68_224 = arith.constant 68 : index
    %467 = vector.load %arg5[%c1_222, %c0_223, %c68_224] : memref<2x1x358xf32, #tpu.memory_space<vmem>>, vector<1x1x256xf32>
    %468 = vector.shape_cast %467 : vector<1x1x256xf32> to vector<1x256xf32>
    %469 = vector.broadcast %466 : f32 to vector<1x256xf32>
    %470 = arith.mulf %469, %468 : vector<1x256xf32>
    %471 = arith.addf %465, %470 : vector<1x256xf32>
    %c88 = arith.constant 88 : index
    %472 = memref.load %arg1[%c88] : memref<98xf32, #tpu.memory_space<smem>>
    %c1_225 = arith.constant 1 : index
    %c0_226 = arith.constant 0 : index
    %c84_227 = arith.constant 84 : index
    %473 = vector.load %arg5[%c1_225, %c0_226, %c84_227] : memref<2x1x358xf32, #tpu.memory_space<vmem>>, vector<1x1x256xf32>
    %474 = vector.shape_cast %473 : vector<1x1x256xf32> to vector<1x256xf32>
    %475 = vector.broadcast %472 : f32 to vector<1x256xf32>
    %476 = arith.mulf %475, %474 : vector<1x256xf32>
    %477 = arith.addf %471, %476 : vector<1x256xf32>
    %c95 = arith.constant 95 : index
    %478 = memref.load %arg1[%c95] : memref<98xf32, #tpu.memory_space<smem>>
    %c1_228 = arith.constant 1 : index
    %c0_229 = arith.constant 0 : index
    %c100_230 = arith.constant 100 : index
    %479 = vector.load %arg5[%c1_228, %c0_229, %c100_230] : memref<2x1x358xf32, #tpu.memory_space<vmem>>, vector<1x1x256xf32>
    %480 = vector.shape_cast %479 : vector<1x1x256xf32> to vector<1x256xf32>
    %481 = vector.broadcast %478 : f32 to vector<1x256xf32>
    %482 = arith.mulf %481, %480 : vector<1x256xf32>
    %483 = arith.addf %477, %482 : vector<1x256xf32>
    %c-1_i32 = arith.constant -1 : i32
    %484 = vector.broadcast %c-1_i32 : i32 to vector<1x256xi32>
    %485 = arith.cmpi sge, %32, %484 : vector<1x256xi32>
    %c15_i32 = arith.constant 15 : i32
    %486 = vector.broadcast %c15_i32 : i32 to vector<1x256xi32>
    %487 = arith.cmpi slt, %32, %486 : vector<1x256xi32>
    %488 = arith.andi %485, %487 : vector<1x256xi1>
    %cst_231 = arith.constant 0.000000e+00 : f32
    %489 = vector.broadcast %cst_231 : f32 to vector<1x256xf32>
    %490 = arith.select %488, %483, %489 : vector<1x256xi1>, vector<1x256xf32>
    %491 = arith.addf %398, %490 : vector<1x256xf32>
    %cst_232 = arith.constant 0.000000e+00 : f32
    %492 = vector.broadcast %cst_232 : f32 to vector<1x256xf32>
    %c5 = arith.constant 5 : index
    %493 = memref.load %arg1[%c5] : memref<98xf32, #tpu.memory_space<smem>>
    %c0_233 = arith.constant 0 : index
    %c0_234 = arith.constant 0 : index
    %c5_235 = arith.constant 5 : index
    %494 = vector.load %arg5[%c0_233, %c0_234, %c5_235] : memref<2x1x358xf32, #tpu.memory_space<vmem>>, vector<1x1x256xf32>
    %495 = vector.shape_cast %494 : vector<1x1x256xf32> to vector<1x256xf32>
    %496 = vector.broadcast %493 : f32 to vector<1x256xf32>
    %497 = arith.mulf %496, %495 : vector<1x256xf32>
    %498 = arith.addf %492, %497 : vector<1x256xf32>
    %c12 = arith.constant 12 : index
    %499 = memref.load %arg1[%c12] : memref<98xf32, #tpu.memory_space<smem>>
    %c0_236 = arith.constant 0 : index
    %c0_237 = arith.constant 0 : index
    %c21_238 = arith.constant 21 : index
    %500 = vector.load %arg5[%c0_236, %c0_237, %c21_238] : memref<2x1x358xf32, #tpu.memory_space<vmem>>, vector<1x1x256xf32>
    %501 = vector.shape_cast %500 : vector<1x1x256xf32> to vector<1x256xf32>
    %502 = vector.broadcast %499 : f32 to vector<1x256xf32>
    %503 = arith.mulf %502, %501 : vector<1x256xf32>
    %504 = arith.addf %498, %503 : vector<1x256xf32>
    %c19_239 = arith.constant 19 : index
    %505 = memref.load %arg1[%c19_239] : memref<98xf32, #tpu.memory_space<smem>>
    %c0_240 = arith.constant 0 : index
    %c0_241 = arith.constant 0 : index
    %c37_242 = arith.constant 37 : index
    %506 = vector.load %arg5[%c0_240, %c0_241, %c37_242] : memref<2x1x358xf32, #tpu.memory_space<vmem>>, vector<1x1x256xf32>
    %507 = vector.shape_cast %506 : vector<1x1x256xf32> to vector<1x256xf32>
    %508 = vector.broadcast %505 : f32 to vector<1x256xf32>
    %509 = arith.mulf %508, %507 : vector<1x256xf32>
    %510 = arith.addf %504, %509 : vector<1x256xf32>
    %c26 = arith.constant 26 : index
    %511 = memref.load %arg1[%c26] : memref<98xf32, #tpu.memory_space<smem>>
    %c0_243 = arith.constant 0 : index
    %c0_244 = arith.constant 0 : index
    %c53_245 = arith.constant 53 : index
    %512 = vector.load %arg5[%c0_243, %c0_244, %c53_245] : memref<2x1x358xf32, #tpu.memory_space<vmem>>, vector<1x1x256xf32>
    %513 = vector.shape_cast %512 : vector<1x1x256xf32> to vector<1x256xf32>
    %514 = vector.broadcast %511 : f32 to vector<1x256xf32>
    %515 = arith.mulf %514, %513 : vector<1x256xf32>
    %516 = arith.addf %510, %515 : vector<1x256xf32>
    %c33_246 = arith.constant 33 : index
    %517 = memref.load %arg1[%c33_246] : memref<98xf32, #tpu.memory_space<smem>>
    %c0_247 = arith.constant 0 : index
    %c0_248 = arith.constant 0 : index
    %c69 = arith.constant 69 : index
    %518 = vector.load %arg5[%c0_247, %c0_248, %c69] : memref<2x1x358xf32, #tpu.memory_space<vmem>>, vector<1x1x256xf32>
    %519 = vector.shape_cast %518 : vector<1x1x256xf32> to vector<1x256xf32>
    %520 = vector.broadcast %517 : f32 to vector<1x256xf32>
    %521 = arith.mulf %520, %519 : vector<1x256xf32>
    %522 = arith.addf %516, %521 : vector<1x256xf32>
    %c40 = arith.constant 40 : index
    %523 = memref.load %arg1[%c40] : memref<98xf32, #tpu.memory_space<smem>>
    %c0_249 = arith.constant 0 : index
    %c0_250 = arith.constant 0 : index
    %c85_251 = arith.constant 85 : index
    %524 = vector.load %arg5[%c0_249, %c0_250, %c85_251] : memref<2x1x358xf32, #tpu.memory_space<vmem>>, vector<1x1x256xf32>
    %525 = vector.shape_cast %524 : vector<1x1x256xf32> to vector<1x256xf32>
    %526 = vector.broadcast %523 : f32 to vector<1x256xf32>
    %527 = arith.mulf %526, %525 : vector<1x256xf32>
    %528 = arith.addf %522, %527 : vector<1x256xf32>
    %c47 = arith.constant 47 : index
    %529 = memref.load %arg1[%c47] : memref<98xf32, #tpu.memory_space<smem>>
    %c0_252 = arith.constant 0 : index
    %c0_253 = arith.constant 0 : index
    %c101 = arith.constant 101 : index
    %530 = vector.load %arg5[%c0_252, %c0_253, %c101] : memref<2x1x358xf32, #tpu.memory_space<vmem>>, vector<1x1x256xf32>
    %531 = vector.shape_cast %530 : vector<1x1x256xf32> to vector<1x256xf32>
    %532 = vector.broadcast %529 : f32 to vector<1x256xf32>
    %533 = arith.mulf %532, %531 : vector<1x256xf32>
    %534 = arith.addf %528, %533 : vector<1x256xf32>
    %c54 = arith.constant 54 : index
    %535 = memref.load %arg1[%c54] : memref<98xf32, #tpu.memory_space<smem>>
    %c1_254 = arith.constant 1 : index
    %c0_255 = arith.constant 0 : index
    %c5_256 = arith.constant 5 : index
    %536 = vector.load %arg5[%c1_254, %c0_255, %c5_256] : memref<2x1x358xf32, #tpu.memory_space<vmem>>, vector<1x1x256xf32>
    %537 = vector.shape_cast %536 : vector<1x1x256xf32> to vector<1x256xf32>
    %538 = vector.broadcast %535 : f32 to vector<1x256xf32>
    %539 = arith.mulf %538, %537 : vector<1x256xf32>
    %540 = arith.addf %534, %539 : vector<1x256xf32>
    %c61 = arith.constant 61 : index
    %541 = memref.load %arg1[%c61] : memref<98xf32, #tpu.memory_space<smem>>
    %c1_257 = arith.constant 1 : index
    %c0_258 = arith.constant 0 : index
    %c21_259 = arith.constant 21 : index
    %542 = vector.load %arg5[%c1_257, %c0_258, %c21_259] : memref<2x1x358xf32, #tpu.memory_space<vmem>>, vector<1x1x256xf32>
    %543 = vector.shape_cast %542 : vector<1x1x256xf32> to vector<1x256xf32>
    %544 = vector.broadcast %541 : f32 to vector<1x256xf32>
    %545 = arith.mulf %544, %543 : vector<1x256xf32>
    %546 = arith.addf %540, %545 : vector<1x256xf32>
    %c68_260 = arith.constant 68 : index
    %547 = memref.load %arg1[%c68_260] : memref<98xf32, #tpu.memory_space<smem>>
    %c1_261 = arith.constant 1 : index
    %c0_262 = arith.constant 0 : index
    %c37_263 = arith.constant 37 : index
    %548 = vector.load %arg5[%c1_261, %c0_262, %c37_263] : memref<2x1x358xf32, #tpu.memory_space<vmem>>, vector<1x1x256xf32>
    %549 = vector.shape_cast %548 : vector<1x1x256xf32> to vector<1x256xf32>
    %550 = vector.broadcast %547 : f32 to vector<1x256xf32>
    %551 = arith.mulf %550, %549 : vector<1x256xf32>
    %552 = arith.addf %546, %551 : vector<1x256xf32>
    %c75 = arith.constant 75 : index
    %553 = memref.load %arg1[%c75] : memref<98xf32, #tpu.memory_space<smem>>
    %c1_264 = arith.constant 1 : index
    %c0_265 = arith.constant 0 : index
    %c53_266 = arith.constant 53 : index
    %554 = vector.load %arg5[%c1_264, %c0_265, %c53_266] : memref<2x1x358xf32, #tpu.memory_space<vmem>>, vector<1x1x256xf32>
    %555 = vector.shape_cast %554 : vector<1x1x256xf32> to vector<1x256xf32>
    %556 = vector.broadcast %553 : f32 to vector<1x256xf32>
    %557 = arith.mulf %556, %555 : vector<1x256xf32>
    %558 = arith.addf %552, %557 : vector<1x256xf32>
    %c82_267 = arith.constant 82 : index
    %559 = memref.load %arg1[%c82_267] : memref<98xf32, #tpu.memory_space<smem>>
    %c1_268 = arith.constant 1 : index
    %c0_269 = arith.constant 0 : index
    %c69_270 = arith.constant 69 : index
    %560 = vector.load %arg5[%c1_268, %c0_269, %c69_270] : memref<2x1x358xf32, #tpu.memory_space<vmem>>, vector<1x1x256xf32>
    %561 = vector.shape_cast %560 : vector<1x1x256xf32> to vector<1x256xf32>
    %562 = vector.broadcast %559 : f32 to vector<1x256xf32>
    %563 = arith.mulf %562, %561 : vector<1x256xf32>
    %564 = arith.addf %558, %563 : vector<1x256xf32>
    %c89 = arith.constant 89 : index
    %565 = memref.load %arg1[%c89] : memref<98xf32, #tpu.memory_space<smem>>
    %c1_271 = arith.constant 1 : index
    %c0_272 = arith.constant 0 : index
    %c85_273 = arith.constant 85 : index
    %566 = vector.load %arg5[%c1_271, %c0_272, %c85_273] : memref<2x1x358xf32, #tpu.memory_space<vmem>>, vector<1x1x256xf32>
    %567 = vector.shape_cast %566 : vector<1x1x256xf32> to vector<1x256xf32>
    %568 = vector.broadcast %565 : f32 to vector<1x256xf32>
    %569 = arith.mulf %568, %567 : vector<1x256xf32>
    %570 = arith.addf %564, %569 : vector<1x256xf32>
    %c96_274 = arith.constant 96 : index
    %571 = memref.load %arg1[%c96_274] : memref<98xf32, #tpu.memory_space<smem>>
    %c1_275 = arith.constant 1 : index
    %c0_276 = arith.constant 0 : index
    %c101_277 = arith.constant 101 : index
    %572 = vector.load %arg5[%c1_275, %c0_276, %c101_277] : memref<2x1x358xf32, #tpu.memory_space<vmem>>, vector<1x1x256xf32>
    %573 = vector.shape_cast %572 : vector<1x1x256xf32> to vector<1x256xf32>
    %574 = vector.broadcast %571 : f32 to vector<1x256xf32>
    %575 = arith.mulf %574, %573 : vector<1x256xf32>
    %576 = arith.addf %570, %575 : vector<1x256xf32>
    %c-2_i32 = arith.constant -2 : i32
    %577 = vector.broadcast %c-2_i32 : i32 to vector<1x256xi32>
    %578 = arith.cmpi sge, %32, %577 : vector<1x256xi32>
    %c14_i32 = arith.constant 14 : i32
    %579 = vector.broadcast %c14_i32 : i32 to vector<1x256xi32>
    %580 = arith.cmpi slt, %32, %579 : vector<1x256xi32>
    %581 = arith.andi %578, %580 : vector<1x256xi1>
    %cst_278 = arith.constant 0.000000e+00 : f32
    %582 = vector.broadcast %cst_278 : f32 to vector<1x256xf32>
    %583 = arith.select %581, %576, %582 : vector<1x256xi1>, vector<1x256xf32>
    %584 = arith.addf %491, %583 : vector<1x256xf32>
    %cst_279 = arith.constant 0.000000e+00 : f32
    %585 = vector.broadcast %cst_279 : f32 to vector<1x256xf32>
    %c6 = arith.constant 6 : index
    %586 = memref.load %arg1[%c6] : memref<98xf32, #tpu.memory_space<smem>>
    %c0_280 = arith.constant 0 : index
    %c0_281 = arith.constant 0 : index
    %c6_282 = arith.constant 6 : index
    %587 = vector.load %arg5[%c0_280, %c0_281, %c6_282] : memref<2x1x358xf32, #tpu.memory_space<vmem>>, vector<1x1x256xf32>
    %588 = vector.shape_cast %587 : vector<1x1x256xf32> to vector<1x256xf32>
    %589 = vector.broadcast %586 : f32 to vector<1x256xf32>
    %590 = arith.mulf %589, %588 : vector<1x256xf32>
    %591 = arith.addf %585, %590 : vector<1x256xf32>
    %c13 = arith.constant 13 : index
    %592 = memref.load %arg1[%c13] : memref<98xf32, #tpu.memory_space<smem>>
    %c0_283 = arith.constant 0 : index
    %c0_284 = arith.constant 0 : index
    %c22_285 = arith.constant 22 : index
    %593 = vector.load %arg5[%c0_283, %c0_284, %c22_285] : memref<2x1x358xf32, #tpu.memory_space<vmem>>, vector<1x1x256xf32>
    %594 = vector.shape_cast %593 : vector<1x1x256xf32> to vector<1x256xf32>
    %595 = vector.broadcast %592 : f32 to vector<1x256xf32>
    %596 = arith.mulf %595, %594 : vector<1x256xf32>
    %597 = arith.addf %591, %596 : vector<1x256xf32>
    %c20_286 = arith.constant 20 : index
    %598 = memref.load %arg1[%c20_286] : memref<98xf32, #tpu.memory_space<smem>>
    %c0_287 = arith.constant 0 : index
    %c0_288 = arith.constant 0 : index
    %c38_289 = arith.constant 38 : index
    %599 = vector.load %arg5[%c0_287, %c0_288, %c38_289] : memref<2x1x358xf32, #tpu.memory_space<vmem>>, vector<1x1x256xf32>
    %600 = vector.shape_cast %599 : vector<1x1x256xf32> to vector<1x256xf32>
    %601 = vector.broadcast %598 : f32 to vector<1x256xf32>
    %602 = arith.mulf %601, %600 : vector<1x256xf32>
    %603 = arith.addf %597, %602 : vector<1x256xf32>
    %c27 = arith.constant 27 : index
    %604 = memref.load %arg1[%c27] : memref<98xf32, #tpu.memory_space<smem>>
    %c0_290 = arith.constant 0 : index
    %c0_291 = arith.constant 0 : index
    %c54_292 = arith.constant 54 : index
    %605 = vector.load %arg5[%c0_290, %c0_291, %c54_292] : memref<2x1x358xf32, #tpu.memory_space<vmem>>, vector<1x1x256xf32>
    %606 = vector.shape_cast %605 : vector<1x1x256xf32> to vector<1x256xf32>
    %607 = vector.broadcast %604 : f32 to vector<1x256xf32>
    %608 = arith.mulf %607, %606 : vector<1x256xf32>
    %609 = arith.addf %603, %608 : vector<1x256xf32>
    %c34_293 = arith.constant 34 : index
    %610 = memref.load %arg1[%c34_293] : memref<98xf32, #tpu.memory_space<smem>>
    %c0_294 = arith.constant 0 : index
    %c0_295 = arith.constant 0 : index
    %c70_296 = arith.constant 70 : index
    %611 = vector.load %arg5[%c0_294, %c0_295, %c70_296] : memref<2x1x358xf32, #tpu.memory_space<vmem>>, vector<1x1x256xf32>
    %612 = vector.shape_cast %611 : vector<1x1x256xf32> to vector<1x256xf32>
    %613 = vector.broadcast %610 : f32 to vector<1x256xf32>
    %614 = arith.mulf %613, %612 : vector<1x256xf32>
    %615 = arith.addf %609, %614 : vector<1x256xf32>
    %c41 = arith.constant 41 : index
    %616 = memref.load %arg1[%c41] : memref<98xf32, #tpu.memory_space<smem>>
    %c0_297 = arith.constant 0 : index
    %c0_298 = arith.constant 0 : index
    %c86_299 = arith.constant 86 : index
    %617 = vector.load %arg5[%c0_297, %c0_298, %c86_299] : memref<2x1x358xf32, #tpu.memory_space<vmem>>, vector<1x1x256xf32>
    %618 = vector.shape_cast %617 : vector<1x1x256xf32> to vector<1x256xf32>
    %619 = vector.broadcast %616 : f32 to vector<1x256xf32>
    %620 = arith.mulf %619, %618 : vector<1x256xf32>
    %621 = arith.addf %615, %620 : vector<1x256xf32>
    %c48_300 = arith.constant 48 : index
    %622 = memref.load %arg1[%c48_300] : memref<98xf32, #tpu.memory_space<smem>>
    %c0_301 = arith.constant 0 : index
    %c0_302 = arith.constant 0 : index
    %c102 = arith.constant 102 : index
    %623 = vector.load %arg5[%c0_301, %c0_302, %c102] : memref<2x1x358xf32, #tpu.memory_space<vmem>>, vector<1x1x256xf32>
    %624 = vector.shape_cast %623 : vector<1x1x256xf32> to vector<1x256xf32>
    %625 = vector.broadcast %622 : f32 to vector<1x256xf32>
    %626 = arith.mulf %625, %624 : vector<1x256xf32>
    %627 = arith.addf %621, %626 : vector<1x256xf32>
    %c55 = arith.constant 55 : index
    %628 = memref.load %arg1[%c55] : memref<98xf32, #tpu.memory_space<smem>>
    %c1_303 = arith.constant 1 : index
    %c0_304 = arith.constant 0 : index
    %c6_305 = arith.constant 6 : index
    %629 = vector.load %arg5[%c1_303, %c0_304, %c6_305] : memref<2x1x358xf32, #tpu.memory_space<vmem>>, vector<1x1x256xf32>
    %630 = vector.shape_cast %629 : vector<1x1x256xf32> to vector<1x256xf32>
    %631 = vector.broadcast %628 : f32 to vector<1x256xf32>
    %632 = arith.mulf %631, %630 : vector<1x256xf32>
    %633 = arith.addf %627, %632 : vector<1x256xf32>
    %c62 = arith.constant 62 : index
    %634 = memref.load %arg1[%c62] : memref<98xf32, #tpu.memory_space<smem>>
    %c1_306 = arith.constant 1 : index
    %c0_307 = arith.constant 0 : index
    %c22_308 = arith.constant 22 : index
    %635 = vector.load %arg5[%c1_306, %c0_307, %c22_308] : memref<2x1x358xf32, #tpu.memory_space<vmem>>, vector<1x1x256xf32>
    %636 = vector.shape_cast %635 : vector<1x1x256xf32> to vector<1x256xf32>
    %637 = vector.broadcast %634 : f32 to vector<1x256xf32>
    %638 = arith.mulf %637, %636 : vector<1x256xf32>
    %639 = arith.addf %633, %638 : vector<1x256xf32>
    %c69_309 = arith.constant 69 : index
    %640 = memref.load %arg1[%c69_309] : memref<98xf32, #tpu.memory_space<smem>>
    %c1_310 = arith.constant 1 : index
    %c0_311 = arith.constant 0 : index
    %c38_312 = arith.constant 38 : index
    %641 = vector.load %arg5[%c1_310, %c0_311, %c38_312] : memref<2x1x358xf32, #tpu.memory_space<vmem>>, vector<1x1x256xf32>
    %642 = vector.shape_cast %641 : vector<1x1x256xf32> to vector<1x256xf32>
    %643 = vector.broadcast %640 : f32 to vector<1x256xf32>
    %644 = arith.mulf %643, %642 : vector<1x256xf32>
    %645 = arith.addf %639, %644 : vector<1x256xf32>
    %c76 = arith.constant 76 : index
    %646 = memref.load %arg1[%c76] : memref<98xf32, #tpu.memory_space<smem>>
    %c1_313 = arith.constant 1 : index
    %c0_314 = arith.constant 0 : index
    %c54_315 = arith.constant 54 : index
    %647 = vector.load %arg5[%c1_313, %c0_314, %c54_315] : memref<2x1x358xf32, #tpu.memory_space<vmem>>, vector<1x1x256xf32>
    %648 = vector.shape_cast %647 : vector<1x1x256xf32> to vector<1x256xf32>
    %649 = vector.broadcast %646 : f32 to vector<1x256xf32>
    %650 = arith.mulf %649, %648 : vector<1x256xf32>
    %651 = arith.addf %645, %650 : vector<1x256xf32>
    %c83_316 = arith.constant 83 : index
    %652 = memref.load %arg1[%c83_316] : memref<98xf32, #tpu.memory_space<smem>>
    %c1_317 = arith.constant 1 : index
    %c0_318 = arith.constant 0 : index
    %c70_319 = arith.constant 70 : index
    %653 = vector.load %arg5[%c1_317, %c0_318, %c70_319] : memref<2x1x358xf32, #tpu.memory_space<vmem>>, vector<1x1x256xf32>
    %654 = vector.shape_cast %653 : vector<1x1x256xf32> to vector<1x256xf32>
    %655 = vector.broadcast %652 : f32 to vector<1x256xf32>
    %656 = arith.mulf %655, %654 : vector<1x256xf32>
    %657 = arith.addf %651, %656 : vector<1x256xf32>
    %c90 = arith.constant 90 : index
    %658 = memref.load %arg1[%c90] : memref<98xf32, #tpu.memory_space<smem>>
    %c1_320 = arith.constant 1 : index
    %c0_321 = arith.constant 0 : index
    %c86_322 = arith.constant 86 : index
    %659 = vector.load %arg5[%c1_320, %c0_321, %c86_322] : memref<2x1x358xf32, #tpu.memory_space<vmem>>, vector<1x1x256xf32>
    %660 = vector.shape_cast %659 : vector<1x1x256xf32> to vector<1x256xf32>
    %661 = vector.broadcast %658 : f32 to vector<1x256xf32>
    %662 = arith.mulf %661, %660 : vector<1x256xf32>
    %663 = arith.addf %657, %662 : vector<1x256xf32>
    %c97_323 = arith.constant 97 : index
    %664 = memref.load %arg1[%c97_323] : memref<98xf32, #tpu.memory_space<smem>>
    %c1_324 = arith.constant 1 : index
    %c0_325 = arith.constant 0 : index
    %c102_326 = arith.constant 102 : index
    %665 = vector.load %arg5[%c1_324, %c0_325, %c102_326] : memref<2x1x358xf32, #tpu.memory_space<vmem>>, vector<1x1x256xf32>
    %666 = vector.shape_cast %665 : vector<1x1x256xf32> to vector<1x256xf32>
    %667 = vector.broadcast %664 : f32 to vector<1x256xf32>
    %668 = arith.mulf %667, %666 : vector<1x256xf32>
    %669 = arith.addf %663, %668 : vector<1x256xf32>
    %c-3_i32 = arith.constant -3 : i32
    %670 = vector.broadcast %c-3_i32 : i32 to vector<1x256xi32>
    %671 = arith.cmpi sge, %32, %670 : vector<1x256xi32>
    %c13_i32 = arith.constant 13 : i32
    %672 = vector.broadcast %c13_i32 : i32 to vector<1x256xi32>
    %673 = arith.cmpi slt, %32, %672 : vector<1x256xi32>
    %674 = arith.andi %671, %673 : vector<1x256xi1>
    %cst_327 = arith.constant 0.000000e+00 : f32
    %675 = vector.broadcast %cst_327 : f32 to vector<1x256xf32>
    %676 = arith.select %674, %669, %675 : vector<1x256xi1>, vector<1x256xf32>
    %677 = arith.addf %584, %676 : vector<1x256xf32>
    %c0_328 = arith.constant 0 : index
    %678 = memref.load %arg2[%c0_328] : memref<2xf32, #tpu.memory_space<smem>>
    %679 = vector.broadcast %678 : f32 to vector<1x256xf32>
    %680 = arith.mulf %677, %679 : vector<1x256xf32>
    %c1_329 = arith.constant 1 : index
    %681 = memref.load %arg2[%c1_329] : memref<2xf32, #tpu.memory_space<smem>>
    %682 = vector.broadcast %681 : f32 to vector<1x256xf32>
    %683 = arith.addf %680, %682 : vector<1x256xf32>
    %cst_330 = arith.constant 0.000000e+00 : f32
    %684 = vector.broadcast %cst_330 : f32 to vector<1x256xf32>
    %685 = arith.subf %684, %683 : vector<1x256xf32>
    %686 = math.exp %685 : vector<1x256xf32>
    %cst_331 = arith.constant 1.000000e+00 : f32
    %687 = vector.broadcast %cst_331 : f32 to vector<1x256xf32>
    %688 = arith.addf %687, %686 : vector<1x256xf32>
    %689 = tpu.reciprocal %688 {approx = true} : vector<1x256xf32> -> vector<1x256xf32>
    %c0_332 = arith.constant 0 : index
    %c0_333 = arith.constant 0 : index
    %c0_334 = arith.constant 0 : index
    %690 = vector.load %arg3[%c0_332, %c0_333, %c0_334] : memref<1x4x256xf32, #tpu.memory_space<vmem>>, vector<1x4x256xf32>
    %691 = vector.shape_cast %689 : vector<1x256xf32> to vector<1x1x256xf32>
    %692 = vector.broadcast %691 : vector<1x1x256xf32> to vector<1x4x256xf32>
    %693 = arith.mulf %690, %692 : vector<1x4x256xf32>
    %c0_335 = arith.constant 0 : index
    %c0_336 = arith.constant 0 : index
    %c0_337 = arith.constant 0 : index
    %694 = vector.load %arg4[%c0_335, %c0_336, %c0_337] : memref<1x4x256xf32, #tpu.memory_space<vmem>>, vector<1x4x256xf32>
    tpu.vector_store %arg4[%c0_335, %c0_336, %c0_337], %693 {strides = array<i32>} : memref<1x4x256xf32, #tpu.memory_space<vmem>>, vector<1x4x256xf32>,
    return
  }
  func.func @transform_0(%arg0: i32) -> i32 {
    %c0_i32 = arith.constant 0 : i32
    %c0_i32_0 = arith.constant 0 : i32
    return %c0_i32 : i32
  }
  func.func @transform_1(%arg0: i32) -> i32 {
    %c0_i32 = arith.constant 0 : i32
    %c0_i32_0 = arith.constant 0 : i32
    return %c0_i32 : i32
  }
  func.func @transform_2(%arg0: i32) -> (i32, i32, i32) {
    %c0_i32 = arith.constant 0 : i32
    %c0_i32_0 = arith.constant 0 : i32
    %c0_i32_1 = arith.constant 0 : i32
    return %arg0, %c0_i32, %c0_i32_0 : i32, i32, i32
  }
  func.func @transform_3(%arg0: i32) -> (i32, i32, i32) {
    %c0_i32 = arith.constant 0 : i32
    %c0_i32_0 = arith.constant 0 : i32
    %c0_i32_1 = arith.constant 0 : i32
    return %arg0, %c0_i32, %c0_i32_0 : i32, i32, i32
  }
}

</mosaic_0001>

<llo_original>
// kernel: tpu_custom_call.1
$region0: #{tpu_custom_call.1}
  #allocation0 [shape = 'u32[]', space=smem, size = 0x4, offset = 0x4, fixed_abs, tag = 'smem constant byte address 0x4 - core index']
  #allocation1 [shape = 'u32[144,128]{1,0:T(1,128)}', space=vmem, size = 0x12000, scoped, tag = 'internal scratch']
  #allocation2 [shape = 'f32[2,1,358]{2,1,0:T(1,128)}', space=vmem, size = 0xc00, scoped, tag = 'scratch operand']
  %s0 = inlined_call_operand.hbm [shape: f32[98], index: 0, kind: input, shape index: {}]
  %s1 = inlined_call_operand.vmem [shape: f32[2], index: 1, kind: input, shape index: {}]
  %s2 = inlined_call_operand.hbm [shape: f32[2,4,256], index: 2, kind: input, shape index: {}]
  %s3 = inlined_call_operand.hbm [shape: f32[2,4,256], index: 3, kind: output, shape index: {}]
  %s4 = sld [smem:[#allocation0]]
  $region57: #{tpu_custom_call.1} parent=0
    _
  %s6 = ssub.s32 1, %s4
  %s7 = scalar_select 0, %s6, %s4
  $region1: #{tpu_custom_call.1} parent=0
    #allocation3 [shape = 'u8[512]{0}', space=smem, size = 0x200, scoped, tag = 'input window, operand 0, single buffered']
    #allocation4 [shape = 's32[2]{0}', space=sflag, size = 0x8, scoped, tag = 'scoped memory for tpu_custom_call.1']
    #allocation5 [shape = 's32[2]{0}', space=sflag, size = 0x8, scoped, tag = 'scoped memory for tpu_custom_call.1']
    #allocation6 [shape = 's32[2]{0}', space=sflag, size = 0x8, scoped, tag = 'scoped memory for tpu_custom_call.1']
    #allocation7 [shape = 's32[2]{0}', space=sflag, size = 0x8, scoped, tag = 'scoped memory for tpu_custom_call.1']
    #allocation8 [shape = 'u8[512]{0}', space=smem, size = 0x200, scoped, tag = 'input window, operand 1, single buffered']
    #allocation9 [shape = 'u8[8192]{0}', space=vmem, size = 0x2000, scoped, tag = 'input window, operand 2']
    #allocation10 [shape = 'u8[8192]{0}', space=vmem, size = 0x2000, scoped, tag = 'output window, operand 0']
    %8 = vsyncpa [#allocation6], 0
    %9 = vsyncpa [#allocation7], 0
    %10 = vsyncpa [#allocation4], 0
    %s11 = scalar_lea.sflag [#allocation4], 1
    %12 = vsyncpa %s11, 0
    %13 = vsyncpa [#allocation5], 0
    %s14 = scalar_lea.sflag [#allocation5], 1
    %15 = vsyncpa %s14, 0
    loop: start=0, step=1, limit=4
    $region2: #{tpu_custom_call.1} parent=1 // loop_pre_header
      _
    $region3: #{tpu_custom_call.1} parent=1 // loop_header
      %s17 = sphi 0, %s21
      %p18 = scmp.ge.s32.totalorder %s17, 4
      %s25 = sphi 0, %s25
      %s27 = sphi 0, %s25
      %s28 = sphi 0, %s27
      %s42 = sphi 0, %s28
      %s46 = sphi 0, %s46
      %s48 = sphi 0, %s46
      %s49 = sphi 0, %s48
      %s63 = sphi 0, %s49
      %s69 = sphi 0, %s71
      %s72 = sphi 0, %s69
      %s73 = sphi 0, %s72
      %s89 = sphi 0, %s73
      %s95 = sphi 0, %s97
      %s98 = sphi 0, %s95
      %s99 = sphi 0, %s98
      %s115 = sphi 0, %s99
    $region4: #{tpu_custom_call.1} parent=1 // loop_header_branch
      %20 = sbr.rel (%p18) target = $region8
    $region5: #{tpu_custom_call.1} parent=1 // loop_body
      %s22 = ssub.s32 %s17, 1
      %s23 = ssub.s32 %s17, 2
      %s24 = sadd.s32 %s17, 1
      %s26 = sadd.s32 %s25, 1
      %p29 = scmp.eq.s32.totalorder %s17, 1
      %p30 = scmp.ne.s32.totalorder %s25, %s27
      %p31 = scmp.eq.s32.totalorder %s17, 0
      %p32 = por %p30, %p31
      %p33 = scmp.ne.s32.totalorder %s25, %s27
      %p34 = scmp.eq.s32.totalorder %s22, 1
      %p35 = por %p33, %p34
      %p36 = scmp.ne.s32.totalorder %s27, %s28
      %p37 = scmp.eq.s32.totalorder %s22, 0
      %p38 = por %p36, %p37
      %p39 = scmp.ne.s32.totalorder %s27, %s28
      %p40 = scmp.eq.s32.totalorder %s23, 1
      %p41 = por %p39, %p40
      %p43 = scmp.ne.s32.totalorder %s28, %s42
      %p44 = scmp.eq.s32.totalorder %s23, 0
      %p45 = por %p43, %p44
      %s47 = sadd.s32 %s46, 1
      %p50 = scmp.eq.s32.totalorder %s17, 1
      %p51 = scmp.ne.s32.totalorder %s46, %s48
      %p52 = scmp.eq.s32.totalorder %s17, 0
      %p53 = por %p51, %p52
      %p54 = scmp.ne.s32.totalorder %s46, %s48
      %p55 = scmp.eq.s32.totalorder %s22, 1
      %p56 = por %p54, %p55
      %p57 = scmp.ne.s32.totalorder %s48, %s49
      %p58 = scmp.eq.s32.totalorder %s22, 0
      %p59 = por %p57, %p58
      %p60 = scmp.ne.s32.totalorder %s48, %s49
      %p61 = scmp.eq.s32.totalorder %s23, 1
      %p62 = por %p60, %p61
      %p64 = scmp.ne.s32.totalorder %s49, %s63
      %p65 = scmp.eq.s32.totalorder %s23, 0
      %p66 = por %p64, %p65
      %s67 = ssub.s32 %s17, %s24
      %p68 = scmp.eq.s32.totalorder %s67, 0
      %s70 = sadd.s32 %s69, 1
      %s71 = scalar_select %p68, %s69, %s70
      %p74 = pneg %p68
      %p75 = scmp.eq.s32.totalorder %s17, 1
      %p76 = por %p74, %p75
      %p77 = scmp.ne.s32.totalorder %s69, %s72
      %p78 = scmp.eq.s32.totalorder %s17, 0
      %p79 = por %p77, %p78
      %p80 = scmp.ne.s32.totalorder %s69, %s72
      %p81 = scmp.eq.s32.totalorder %s22, 1
      %p82 = por %p80, %p81
      %p83 = scmp.ne.s32.totalorder %s72, %s73
      %p84 = scmp.eq.s32.totalorder %s22, 0
      %p85 = por %p83, %p84
      %p86 = scmp.ne.s32.totalorder %s72, %s73
      %p87 = scmp.eq.s32.totalorder %s23, 1
      %p88 = por %p86, %p87
      %p90 = scmp.ne.s32.totalorder %s73, %s89
      %p91 = scmp.eq.s32.totalorder %s23, 0
      %p92 = por %p90, %p91
      %s93 = ssub.s32 %s17, %s24
      %p94 = scmp.eq.s32.totalorder %s93, 0
      %s96 = sadd.s32 %s95, 1
      %s97 = scalar_select %p94, %s95, %s96
      %p100 = pneg %p94
      %p101 = scmp.eq.s32.totalorder %s17, 1
      %p102 = por %p100, %p101
      %p103 = scmp.ne.s32.totalorder %s95, %s98
      %p104 = scmp.eq.s32.totalorder %s17, 0
      %p105 = por %p103, %p104
      %p106 = scmp.ne.s32.totalorder %s95, %s98
      %p107 = scmp.eq.s32.totalorder %s22, 1
      %p108 = por %p106, %p107
      %p109 = scmp.ne.s32.totalorder %s98, %s99
      %p110 = scmp.eq.s32.totalorder %s22, 0
      %p111 = por %p109, %p110
      %p112 = scmp.ne.s32.totalorder %s98, %s99
      %p113 = scmp.eq.s32.totalorder %s23, 1
      %p114 = por %p112, %p113
      %p116 = scmp.ne.s32.totalorder %s99, %s115
      %p117 = scmp.eq.s32.totalorder %s23, 0
      %p118 = por %p116, %p117
      %p119 = scmp.le.s32.totalorder 1, %s17
      %p120 = scmp.lt.s32.totalorder %s17, 3
      %p121 = pnand %p119, %p120
      %p122 = pneg %p121
      // Predicated region
      $region9: #{tpu_custom_call.1} parent=5 // pred_check
        _
      $region10: #{tpu_custom_call.1} parent=5 // pred_check_branch
        %124 = sbr.rel (%p121) target = $region12
      $region11: #{tpu_custom_call.1} parent=5 // pred_region
        %s125 = ssub.s32 %s17, 1
        // Predicated region
        $region13: #{tpu_custom_call.1} parent=11 // pred_check
          %p126 = pneg %p38
        $region14: #{tpu_custom_call.1} parent=11 // pred_check_branch
          %128 = sbr.rel (%p126) target = $region16
        $region15: #{tpu_custom_call.1} parent=11 // pred_region
          %s130 = ssub.s32 16, 16
          %131 = vsyncadd [#allocation6], %s130
          %134 = dma.hbm_to_smem %s0, 16, [#allocation3], [#allocation6]
        $region16: #{tpu_custom_call.1} parent=11 // pred_fallthru
          _
        // Predicated region
        $region17: #{tpu_custom_call.1} parent=11 // pred_check
          %p135 = pneg %p59
        $region18: #{tpu_custom_call.1} parent=11 // pred_check_branch
          %137 = sbr.rel (%p135) target = $region20
        $region19: #{tpu_custom_call.1} parent=11 // pred_region
          %s139 = ssub.s32 16, 16
          %140 = vsyncadd [#allocation7], %s139
          %s142 = sshll.u32 %s1, 4
          %s143 = int_to_ptr.vmem [resolvable:$true] %s142
          %145 = dma.vmem_to_smem %s143, 16, [#allocation8], [#allocation7]
        $region20: #{tpu_custom_call.1} parent=11 // pred_fallthru
          _
      $region12: #{tpu_custom_call.1} parent=5 // pred_fallthru
        _
      %p146 = scmp.lt.s32.totalorder %s17, 2
      // Predicated region
      $region21: #{tpu_custom_call.1} parent=5 // pred_check
        %p147 = pneg %p146
      $region22: #{tpu_custom_call.1} parent=5 // pred_check_branch
        %149 = sbr.rel (%p147) target = $region24
      $region23: #{tpu_custom_call.1} parent=5 // pred_region
        // Predicated region
        $region25: #{tpu_custom_call.1} parent=23 // pred_check
          %p150 = pneg %p79
        $region26: #{tpu_custom_call.1} parent=23 // pred_check_branch
          %152 = sbr.rel (%p150) target = $region28
        $region27: #{tpu_custom_call.1} parent=23 // pred_region
          %s153 = sand.u32 %s69, 1
          %s154 = scalar_lea.sflag [#allocation4], %s153
          %s155 = sand.u32 %s69, 1
          %s156 = smul.addr %s155, 8
          %s157 = scalar_lea.vmem [#allocation9], %s156
          %s159 = ssub.s32 128, 128
          %160 = vsyncadd %s154, %s159
          %s161 = smul.addr %s17, 2
          %s162 = smul.addr %s161, 64
          %s163 = scalar_lea.hbm %s2, %s162
          %s165 = sshll.u32 %s157, 4
          %s166 = int_to_ptr.vmem [resolvable:$true] %s165
          %168 = dma.hbm_to_vmem [thread:$0]  %s163, 128, %s166, %s154
        $region28: #{tpu_custom_call.1} parent=23 // pred_fallthru
          _
      $region24: #{tpu_custom_call.1} parent=5 // pred_fallthru
        _
      %p169 = scmp.le.s32.totalorder 1, %s17
      %p170 = scmp.lt.s32.totalorder %s17, 3
      %p171 = pnand %p169, %p170
      %p172 = pneg %p171
      // Predicated region
      $region29: #{tpu_custom_call.1} parent=5 // pred_check
        _
      $region30: #{tpu_custom_call.1} parent=5 // pred_check_branch
        %174 = sbr.rel (%p171) target = $region32
      $region31: #{tpu_custom_call.1} parent=5 // pred_region
        %s175 = ssub.s32 %s17, 1
        // Predicated region
        $region33: #{tpu_custom_call.1} parent=31 // pred_check
          %p176 = pneg %p38
        $region34: #{tpu_custom_call.1} parent=31 // pred_check_branch
          %178 = sbr.rel (%p176) target = $region36
        $region35: #{tpu_custom_call.1} parent=31 // pred_region
          %179 = dma.done [#allocation6], 16
        $region36: #{tpu_custom_call.1} parent=31 // pred_fallthru
          _
        // Predicated region
        $region37: #{tpu_custom_call.1} parent=31 // pred_check
          %p180 = pneg %p59
        $region38: #{tpu_custom_call.1} parent=31 // pred_check_branch
          %182 = sbr.rel (%p180) target = $region40
        $region39: #{tpu_custom_call.1} parent=31 // pred_region
          %183 = dma.done [#allocation7], 16
        $region40: #{tpu_custom_call.1} parent=31 // pred_fallthru
          _
        %s184 = sand.u32 %s72, 1
        %s185 = scalar_lea.sflag [#allocation4], %s184
        %s186 = sand.u32 %s72, 1
        %s187 = smul.addr %s186, 8
        %s188 = scalar_lea.vmem [#allocation9], %s187
        // Predicated region
        $region41: #{tpu_custom_call.1} parent=31 // pred_check
          %p189 = pneg %p85
        $region42: #{tpu_custom_call.1} parent=31 // pred_check_branch
          %191 = sbr.rel (%p189) target = $region44
        $region43: #{tpu_custom_call.1} parent=31 // pred_region
          %192 = dma.done %s185, 128
        $region44: #{tpu_custom_call.1} parent=31 // pred_fallthru
          _
        %193 = sfence
        %p194 = pneg %p38
        %p195 = pneg %p35
        %p196 = pneg %p59
        %p197 = pneg %p56
        %s198 = sand.u32 %s72, 1
        %s199 = scalar_lea.sflag [#allocation4], %s198
        %s200 = sand.u32 %s72, 1
        %s201 = smul.addr %s200, 8
        %s202 = scalar_lea.vmem [#allocation9], %s201
        %p203 = pneg %p85
        %p204 = pneg %p82
        %p205 = pneg %p111
        %p206 = pneg %p108
        %s207 = sand.u32 %s98, 1
        %s208 = scalar_lea.sflag [#allocation5], %s207
        %s209 = sand.u32 %s98, 1
        %s210 = smul.addr %s209, 8
        %s211 = scalar_lea.vmem [#allocation10], %s210
        %v212 = vld [vmem:[%s188] sm:$0xff]
        %v214 = vcombine.high %v212, %v212
        %vm216 = vcmask 1043456
        %v217 = vsel %vm216, %v212, -inf
        %v218 = vrot.slane %v217, 4
        %v219 = vmax.f32 %v217, %v218
        %v220 = vrot.slane %v219, 2
        %v221 = vmax.f32 %v219, %v220
        %v222 = vrot.slane %v221, 1
        %v223 = vmax.f32 %v221, %v222
        %v224 = vsel %vm216, %v214, -inf
        %v225 = vrot.slane %v224, 4
        %v226 = vmax.f32 %v224, %v225
        %v227 = vrot.slane %v226, 2
        %v228 = vmax.f32 %v226, %v227
        %v229 = vrot.slane %v228, 1
        %v230 = vmax.f32 %v228, %v229
        %v231 = vsel %vm216, %v212, 0.0
        %v232 = vrot.slane %v231, 4
        %v233 = vadd.f32 %v231, %v232
        %v234 = vrot.slane %v233, 2
        %v235 = vadd.f32 %v233, %v234
        %v236 = vrot.slane %v235, 1
        %v237 = vadd.f32 %v235, %v236
        %v238 = vsel %vm216, %v214, 0.0
        %v239 = vrot.slane %v238, 4
        %v240 = vadd.f32 %v238, %v239
        %v241 = vrot.slane %v240, 2
        %v242 = vadd.f32 %v240, %v241
        %v243 = vrot.slane %v242, 1
        %v244 = vadd.f32 %v242, %v243
        %v245 = vrcp.pop 4.0
        %v246 = vmul.f32 %v237, %v245
        %v247 = vmul.f32 %v244, %v245
        %v248 = vlaneseq
        %vm249 = vcmp.ge.s32.totalorder %v248, 0
        %vm250 = vcmp.lt.s32.totalorder %v248, 51
        %vm251 = vmand %vm249, %vm250
        %252 = vst.msk [vmem:[#allocation2] sm:$0x1] %vm251, 0.0
        %253 = vst.msk [vmem:[#allocation2 + $0x3] sm:$0x1] %vm251, 0.0
        %vm254 = vcmp.ge.s32.totalorder %v248, 51
        %vm255 = vcmp.lt.s32.totalorder %v248, 102
        %vm256 = vmand %vm254, %vm255
        %257 = vst.msk [vmem:[#allocation2 + $0x2] sm:$0x1] %vm256, 0.0
        %258 = vst.msk [vmem:[#allocation2 + $0x5] sm:$0x1] %vm256, 0.0
        %v261 = vcombine.low %v223, %v230
        %v263 = vunpack.c.l.s4 1966171168
        %v264 = vunpack.c.0.s8 %v263
        %v265 = vlaneseq
        %v266 = vshrl.u32 %v265, 7
        %v267 = vsub.s32 %v264, %v266
        %v268 = vrot.slane %v261, %v267
        %v270 = vunpack.c.l.s4 1966171168
        %v271 = vunpack.c.0.s8 %v270
        %v272 = vlaneseq
        %v273 = vshrl.u32 %v272, 7
        %v274 = vsub.s32 %v271, %v273
        %v275 = vrot.slane %v268, %v274
        %276 = vrot.lane.b32.xlu0 %v275, 51
        %v277 = vpop.permute.xlu0 %276
        %v278 = vrot.slane %v277, 7
        %vm279 = vcmask 416768
        %v280 = vsel %vm279, %v278, %v277
        %vm282 = vcmp.lt.s32.totalorder %v248, 307
        %vm283 = vmand %vm254, %vm282
        %284 = vst.msk [vmem:[#allocation2] sm:$0x7] %vm283, %v280
        %v287 = vcombine.low %v246, %v247
        %v289 = vunpack.c.l.s4 1966171168
        %v290 = vunpack.c.0.s8 %v289
        %v291 = vlaneseq
        %v292 = vshrl.u32 %v291, 7
        %v293 = vsub.s32 %v290, %v292
        %v294 = vrot.slane %v287, %v293
        %v296 = vunpack.c.l.s4 1966171168
        %v297 = vunpack.c.0.s8 %v296
        %v298 = vlaneseq
        %v299 = vshrl.u32 %v298, 7
        %v300 = vsub.s32 %v297, %v299
        %v301 = vrot.slane %v294, %v300
        %302 = vrot.lane.b32.xlu0 %v301, 51
        %v303 = vpop.permute.xlu0 %302
        %v304 = vrot.slane %v303, 7
        %v305 = vsel %vm279, %v304, %v303
        %s307 = scalar_lea.vmem [#allocation2], 3
        %308 = vst.msk [vmem:[%s307] sm:$0x7] %vm283, %v305
        %v309 = vlaneseq
        %v310 = vand.u32 %v309, 127
        %v311 = vadd.s32 %v310, 128
        %vm312 = vcmp.lt.s32.totalorder %v310, 0
        %v313 = vsub.s32 0, %v310
        %v314 = vsel %vm312, %v313, %v310
        %v315 = vshrl.u32 %v314, 4
        %v316 = vand.u32 %v314, 15
        %v317 = vsub.s32 0, %v316
        %v318 = vsel %vm312, %v317, %v316
        %vm319 = vcmp.lt.s32.totalorder %v311, 0
        %v320 = vsub.s32 0, %v311
        %v321 = vsel %vm319, %v320, %v311
        %v322 = vshrl.u32 %v321, 4
        %v323 = vand.u32 %v321, 15
        %v324 = vsub.s32 0, %v323
        %v325 = vsel %vm319, %v324, %v323
        %vm326 = vcmp.ne.s32.totalorder %v318, 0
        %vm327 = vcmp.ne.s32.totalorder %v325, 0
        %vm328 = vcmp.lt.s32.totalorder %v318, 0
        %vm329 = vcmp.lt.s32.totalorder %v325, 0
        %vm330 = vmand %vm328, %vm326
        %vm331 = vmand %vm329, %vm327
        %v332 = vadd.s32 %v318, 16
        %v333 = vadd.s32 %v325, 16
        %v334 = vsel %vm330, %v332, %v318
        %v335 = vsel %vm331, %v333, %v325
        %s336 = sld [smem:[#allocation3]]
        %v337 = vld [vmem:[#allocation2] sm:$0x3]
        %v338 = vstv %s336
        %v339 = vmul.f32 %v338, %v337
        %v340 = vadd.f32 %v339, 0.0
        %s341 = sld [smem:[#allocation3 + $0x7]]
        %v342 = vld [vmem:[#allocation2] sm:$0x7]
        %v343 = vstv %s341
        %v344 = vmul.f32 %v343, %v342
        %346 = vrot.lane.b32.xlu0 %v344, 112
        %v347 = vpop.permute.xlu0 %346
        %v348 = vrot.slane %v347, 1
        %vm349 = vcmask 916480
        %v350 = vsel %vm349, %v347, %v348
        %v352 = vadd.f32 %v340, %v350
        %s353 = sld [smem:[#allocation3 + $0xe]]
        %v354 = vstv %s353
        %v355 = vmul.f32 %v354, %v342
        %357 = vrot.lane.b32.xlu0 %v355, 96
        %v358 = vpop.permute.xlu0 %357
        %v359 = vrot.slane %v358, 1
        %vm360 = vcmask 785408
        %v361 = vsel %vm360, %v358, %v359
        %v363 = vadd.f32 %v352, %v361
        %s364 = sld [smem:[#allocation3 + $0x15]]
        %v365 = vstv %s364
        %v366 = vmul.f32 %v365, %v342
        %368 = vrot.lane.b32.xlu0 %v366, 80
        %v369 = vpop.permute.xlu0 %368
        %v370 = vrot.slane %v369, 1
        %vm371 = vcmask 654336
        %v372 = vsel %vm371, %v369, %v370
        %v374 = vadd.f32 %v363, %v372
        %s375 = sld [smem:[#allocation3 + $0x1c]]
        %v376 = vstv %s375
        %v377 = vmul.f32 %v376, %v342
        %379 = vrot.lane.b32.xlu0 %v377, 64
        %v380 = vpop.permute.xlu0 %379
        %v381 = vrot.slane %v380, 1
        %vm382 = vcmask 523264
        %v383 = vsel %vm382, %v380, %v381
        %v385 = vadd.f32 %v374, %v383
        %s386 = sld [smem:[#allocation3 + $0x23]]
        %v387 = vstv %s386
        %v388 = vmul.f32 %v387, %v342
        %390 = vrot.lane.b32.xlu0 %v388, 48
        %v391 = vpop.permute.xlu0 %390
        %v392 = vrot.slane %v391, 1
        %vm393 = vcmask 392192
        %v394 = vsel %vm393, %v391, %v392
        %v396 = vadd.f32 %v385, %v394
        %s397 = sld [smem:[#allocation3 + $0x2a]]
        %v398 = vstv %s397
        %v399 = vmul.f32 %v398, %v342
        %401 = vrot.lane.b32.xlu0 %v399, 32
        %v402 = vpop.permute.xlu0 %401
        %v403 = vrot.slane %v402, 1
        %vm404 = vcmask 261120
        %v405 = vsel %vm404, %v402, %v403
        %v407 = vadd.f32 %v396, %v405
        %s408 = sld [smem:[#allocation3 + $0x31]]
        %v409 = vld [vmem:[%s307] sm:$0x3]
        %v410 = vstv %s408
        %v411 = vmul.f32 %v410, %v409
        %v412 = vadd.f32 %v407, %v411
        %s413 = sld [smem:[#allocation3 + $0x38]]
        %v414 = vld [vmem:[%s307] sm:$0x7]
        %v415 = vstv %s413
        %v416 = vmul.f32 %v415, %v414
        %418 = vrot.lane.b32.xlu0 %v416, 112
        %v419 = vpop.permute.xlu0 %418
        %v420 = vrot.slane %v419, 1
        %v421 = vsel %vm349, %v419, %v420
        %v423 = vadd.f32 %v412, %v421
        %s424 = sld [smem:[#allocation3 + $0x3f]]
        %v425 = vstv %s424
        %v426 = vmul.f32 %v425, %v414
        %428 = vrot.lane.b32.xlu0 %v426, 96
        %v429 = vpop.permute.xlu0 %428
        %v430 = vrot.slane %v429, 1
        %v431 = vsel %vm360, %v429, %v430
        %v433 = vadd.f32 %v423, %v431
        %s434 = sld [smem:[#allocation3 + $0x46]]
        %v435 = vstv %s434
        %v436 = vmul.f32 %v435, %v414
        %438 = vrot.lane.b32.xlu0 %v436, 80
        %v439 = vpop.permute.xlu0 %438
        %v440 = vrot.slane %v439, 1
        %v441 = vsel %vm371, %v439, %v440
        %v443 = vadd.f32 %v433, %v441
        %s444 = sld [smem:[#allocation3 + $0x4d]]
        %v445 = vstv %s444
        %v446 = vmul.f32 %v445, %v414
        %448 = vrot.lane.b32.xlu0 %v446, 64
        %v449 = vpop.permute.xlu0 %448
        %v450 = vrot.slane %v449, 1
        %v451 = vsel %vm382, %v449, %v450
        %v453 = vadd.f32 %v443, %v451
        %s454 = sld [smem:[#allocation3 + $0x54]]
        %v455 = vstv %s454
        %v456 = vmul.f32 %v455, %v414
        %458 = vrot.lane.b32.xlu0 %v456, 48
        %v459 = vpop.permute.xlu0 %458
        %v460 = vrot.slane %v459, 1
        %v461 = vsel %vm393, %v459, %v460
        %v463 = vadd.f32 %v453, %v461
        %s464 = sld [smem:[#allocation3 + $0x5b]]
        %v465 = vstv %s464
        %v466 = vmul.f32 %v465, %v414
        %468 = vrot.lane.b32.xlu0 %v466, 32
        %v469 = vpop.permute.xlu0 %468
        %v470 = vrot.slane %v469, 1
        %v471 = vsel %vm404, %v469, %v470
        %v473 = vadd.f32 %v463, %v471
        %vm474 = vcmp.ge.s32.totalorder %v334, 3
        %vm475 = vcmp.ge.s32.totalorder %v335, 3
        %vm476 = vcmp.lt.s32.totalorder %v334, 19
        %vm477 = vcmp.lt.s32.totalorder %v335, 19
        %vm478 = vmand %vm474, %vm476
        %vm479 = vmand %vm475, %vm477
        %v481 = vlaneseq
        %v482 = vshrl.u32 %v481, 7
        %v483 = vsub.s32 0, %v482
        %v484 = vrot.slane %v473, %v483
        %v485 = vlaneseq
        %v486 = vshrl.u32 %v485, 7
        %v487 = vsub.s32 1, %v486
        %v488 = vrot.slane %v473, %v487
        %v491 = vsel %vm478, %v484, 0.0
        %v492 = vsel %vm479, %v488, 0.0
        %v493 = vadd.f32 %v491, 0.0
        %v494 = vadd.f32 %v492, 0.0
        %s495 = sld [smem:[#allocation3 + $0x1]]
        %v496 = vstv %s495
        %v497 = vmul.f32 %v496, %v342
        %v498 = vadd.f32 %v497, 0.0
        %s499 = sld [smem:[#allocation3 + $0x8]]
        %v500 = vstv %s499
        %v501 = vmul.f32 %v500, %v342
        %503 = vrot.lane.b32.xlu0 %v501, 112
        %v504 = vpop.permute.xlu0 %503
        %v505 = vrot.slane %v504, 1
        %v506 = vsel %vm349, %v504, %v505
        %v508 = vadd.f32 %v498, %v506
        %s509 = sld [smem:[#allocation3 + $0xf]]
        %v510 = vstv %s509
        %v511 = vmul.f32 %v510, %v342
        %513 = vrot.lane.b32.xlu0 %v511, 96
        %v514 = vpop.permute.xlu0 %513
        %v515 = vrot.slane %v514, 1
        %v516 = vsel %vm360, %v514, %v515
        %v518 = vadd.f32 %v508, %v516
        %s519 = sld [smem:[#allocation3 + $0x16]]
        %v520 = vstv %s519
        %v521 = vmul.f32 %v520, %v342
        %523 = vrot.lane.b32.xlu0 %v521, 80
        %v524 = vpop.permute.xlu0 %523
        %v525 = vrot.slane %v524, 1
        %v526 = vsel %vm371, %v524, %v525
        %v528 = vadd.f32 %v518, %v526
        %s529 = sld [smem:[#allocation3 + $0x1d]]
        %v530 = vstv %s529
        %v531 = vmul.f32 %v530, %v342
        %533 = vrot.lane.b32.xlu0 %v531, 64
        %v534 = vpop.permute.xlu0 %533
        %v535 = vrot.slane %v534, 1
        %v536 = vsel %vm382, %v534, %v535
        %v538 = vadd.f32 %v528, %v536
        %s539 = sld [smem:[#allocation3 + $0x24]]
        %v540 = vstv %s539
        %v541 = vmul.f32 %v540, %v342
        %543 = vrot.lane.b32.xlu0 %v541, 48
        %v544 = vpop.permute.xlu0 %543
        %v545 = vrot.slane %v544, 1
        %v546 = vsel %vm393, %v544, %v545
        %v548 = vadd.f32 %v538, %v546
        %s549 = sld [smem:[#allocation3 + $0x2b]]
        %v550 = vstv %s549
        %v551 = vmul.f32 %v550, %v342
        %553 = vrot.lane.b32.xlu0 %v551, 32
        %v554 = vpop.permute.xlu0 %553
        %v555 = vrot.slane %v554, 1
        %v556 = vsel %vm404, %v554, %v555
        %v558 = vadd.f32 %v548, %v556
        %s559 = sld [smem:[#allocation3 + $0x32]]
        %v560 = vstv %s559
        %v561 = vmul.f32 %v560, %v414
        %v562 = vadd.f32 %v558, %v561
        %s563 = sld [smem:[#allocation3 + $0x39]]
        %v564 = vstv %s563
        %v565 = vmul.f32 %v564, %v414
        %567 = vrot.lane.b32.xlu0 %v565, 112
        %v568 = vpop.permute.xlu0 %567
        %v569 = vrot.slane %v568, 1
        %v570 = vsel %vm349, %v568, %v569
        %v572 = vadd.f32 %v562, %v570
        %s573 = sld [smem:[#allocation3 + $0x40]]
        %v574 = vstv %s573
        %v575 = vmul.f32 %v574, %v414
        %577 = vrot.lane.b32.xlu0 %v575, 96
        %v578 = vpop.permute.xlu0 %577
        %v579 = vrot.slane %v578, 1
        %v580 = vsel %vm360, %v578, %v579
        %v582 = vadd.f32 %v572, %v580
        %s583 = sld [smem:[#allocation3 + $0x47]]
        %v584 = vstv %s583
        %v585 = vmul.f32 %v584, %v414
        %587 = vrot.lane.b32.xlu0 %v585, 80
        %v588 = vpop.permute.xlu0 %587
        %v589 = vrot.slane %v588, 1
        %v590 = vsel %vm371, %v588, %v589
        %v592 = vadd.f32 %v582, %v590
        %s593 = sld [smem:[#allocation3 + $0x4e]]
        %v594 = vstv %s593
        %v595 = vmul.f32 %v594, %v414
        %597 = vrot.lane.b32.xlu0 %v595, 64
        %v598 = vpop.permute.xlu0 %597
        %v599 = vrot.slane %v598, 1
        %v600 = vsel %vm382, %v598, %v599
        %v602 = vadd.f32 %v592, %v600
        %s603 = sld [smem:[#allocation3 + $0x55]]
        %v604 = vstv %s603
        %v605 = vmul.f32 %v604, %v414
        %607 = vrot.lane.b32.xlu0 %v605, 48
        %v608 = vpop.permute.xlu0 %607
        %v609 = vrot.slane %v608, 1
        %v610 = vsel %vm393, %v608, %v609
        %v612 = vadd.f32 %v602, %v610
        %s613 = sld [smem:[#allocation3 + $0x5c]]
        %v614 = vstv %s613
        %v615 = vmul.f32 %v614, %v414
        %617 = vrot.lane.b32.xlu0 %v615, 32
        %v618 = vpop.permute.xlu0 %617
        %v619 = vrot.slane %v618, 1
        %v620 = vsel %vm404, %v618, %v619
        %v622 = vadd.f32 %v612, %v620
        %vm623 = vcmp.ge.s32.totalorder %v334, 2
        %vm624 = vcmp.ge.s32.totalorder %v335, 2
        %vm625 = vcmp.lt.s32.totalorder %v334, 18
        %vm626 = vcmp.lt.s32.totalorder %v335, 18
        %vm627 = vmand %vm623, %vm625
        %vm628 = vmand %vm624, %vm626
        %v630 = vlaneseq
        %v631 = vshrl.u32 %v630, 7
        %v632 = vsub.s32 0, %v631
        %v633 = vrot.slane %v622, %v632
        %v634 = vlaneseq
        %v635 = vshrl.u32 %v634, 7
        %v636 = vsub.s32 1, %v635
        %v637 = vrot.slane %v622, %v636
        %v638 = vlaneseq
        %v639 = vshrl.u32 %v638, 7
        %v640 = vsub.s32 2, %v639
        %v641 = vrot.slane %v622, %v640
        %642 = vrot.lane.b32.xlu0 %v633, 127
        %v643 = vpop.permute.xlu0 %642
        %644 = vrot.lane.b32.xlu0 %v637, 127
        %v645 = vpop.permute.xlu0 %644
        %646 = vrot.lane.b32.xlu0 %v641, 127
        %v647 = vpop.permute.xlu0 %646
        %vm648 = vcmask 1039360
        %v649 = vsel %vm648, %v643, %v645
        %v650 = vsel %vm648, %v645, %v647
        %v653 = vsel %vm627, %v649, 0.0
        %v654 = vsel %vm628, %v650, 0.0
        %v655 = vadd.f32 %v493, %v653
        %v656 = vadd.f32 %v494, %v654
        %s657 = sld [smem:[#allocation3 + $0x2]]
        %v658 = vstv %s657
        %v659 = vmul.f32 %v658, %v342
        %v660 = vadd.f32 %v659, 0.0
        %s661 = sld [smem:[#allocation3 + $0x9]]
        %v662 = vstv %s661
        %v663 = vmul.f32 %v662, %v342
        %665 = vrot.lane.b32.xlu0 %v663, 112
        %v666 = vpop.permute.xlu0 %665
        %v667 = vrot.slane %v666, 1
        %v668 = vsel %vm349, %v666, %v667
        %v670 = vadd.f32 %v660, %v668
        %s671 = sld [smem:[#allocation3 + $0x10]]
        %v672 = vstv %s671
        %v673 = vmul.f32 %v672, %v342
        %675 = vrot.lane.b32.xlu0 %v673, 96
        %v676 = vpop.permute.xlu0 %675
        %v677 = vrot.slane %v676, 1
        %v678 = vsel %vm360, %v676, %v677
        %v680 = vadd.f32 %v670, %v678
        %s681 = sld [smem:[#allocation3 + $0x17]]
        %v682 = vstv %s681
        %v683 = vmul.f32 %v682, %v342
        %685 = vrot.lane.b32.xlu0 %v683, 80
        %v686 = vpop.permute.xlu0 %685
        %v687 = vrot.slane %v686, 1
        %v688 = vsel %vm371, %v686, %v687
        %v690 = vadd.f32 %v680, %v688
        %s691 = sld [smem:[#allocation3 + $0x1e]]
        %v692 = vstv %s691
        %v693 = vmul.f32 %v692, %v342
        %695 = vrot.lane.b32.xlu0 %v693, 64
        %v696 = vpop.permute.xlu0 %695
        %v697 = vrot.slane %v696, 1
        %v698 = vsel %vm382, %v696, %v697
        %v700 = vadd.f32 %v690, %v698
        %s701 = sld [smem:[#allocation3 + $0x25]]
        %v702 = vstv %s701
        %v703 = vmul.f32 %v702, %v342
        %705 = vrot.lane.b32.xlu0 %v703, 48
        %v706 = vpop.permute.xlu0 %705
        %v707 = vrot.slane %v706, 1
        %v708 = vsel %vm393, %v706, %v707
        %v710 = vadd.f32 %v700, %v708
        %s711 = sld [smem:[#allocation3 + $0x2c]]
        %v712 = vstv %s711
        %v713 = vmul.f32 %v712, %v342
        %715 = vrot.lane.b32.xlu0 %v713, 32
        %v716 = vpop.permute.xlu0 %715
        %v717 = vrot.slane %v716, 1
        %v718 = vsel %vm404, %v716, %v717
        %v720 = vadd.f32 %v710, %v718
        %s721 = sld [smem:[#allocation3 + $0x33]]
        %v722 = vstv %s721
        %v723 = vmul.f32 %v722, %v414
        %v724 = vadd.f32 %v720, %v723
        %s725 = sld [smem:[#allocation3 + $0x3a]]
        %v726 = vstv %s725
        %v727 = vmul.f32 %v726, %v414
        %729 = vrot.lane.b32.xlu0 %v727, 112
        %v730 = vpop.permute.xlu0 %729
        %v731 = vrot.slane %v730, 1
        %v732 = vsel %vm349, %v730, %v731
        %v734 = vadd.f32 %v724, %v732
        %s735 = sld [smem:[#allocation3 + $0x41]]
        %v736 = vstv %s735
        %v737 = vmul.f32 %v736, %v414
        %739 = vrot.lane.b32.xlu0 %v737, 96
        %v740 = vpop.permute.xlu0 %739
        %v741 = vrot.slane %v740, 1
        %v742 = vsel %vm360, %v740, %v741
        %v744 = vadd.f32 %v734, %v742
        %s745 = sld [smem:[#allocation3 + $0x48]]
        %v746 = vstv %s745
        %v747 = vmul.f32 %v746, %v414
        %749 = vrot.lane.b32.xlu0 %v747, 80
        %v750 = vpop.permute.xlu0 %749
        %v751 = vrot.slane %v750, 1
        %v752 = vsel %vm371, %v750, %v751
        %v754 = vadd.f32 %v744, %v752
        %s755 = sld [smem:[#allocation3 + $0x4f]]
        %v756 = vstv %s755
        %v757 = vmul.f32 %v756, %v414
        %759 = vrot.lane.b32.xlu0 %v757, 64
        %v760 = vpop.permute.xlu0 %759
        %v761 = vrot.slane %v760, 1
        %v762 = vsel %vm382, %v760, %v761
        %v764 = vadd.f32 %v754, %v762
        %s765 = sld [smem:[#allocation3 + $0x56]]
        %v766 = vstv %s765
        %v767 = vmul.f32 %v766, %v414
        %769 = vrot.lane.b32.xlu0 %v767, 48
        %v770 = vpop.permute.xlu0 %769
        %v771 = vrot.slane %v770, 1
        %v772 = vsel %vm393, %v770, %v771
        %v774 = vadd.f32 %v764, %v772
        %s775 = sld [smem:[#allocation3 + $0x5d]]
        %v776 = vstv %s775
        %v777 = vmul.f32 %v776, %v414
        %779 = vrot.lane.b32.xlu0 %v777, 32
        %v780 = vpop.permute.xlu0 %779
        %v781 = vrot.slane %v780, 1
        %v782 = vsel %vm404, %v780, %v781
        %v784 = vadd.f32 %v774, %v782
        %vm785 = vcmp.ge.s32.totalorder %v334, 1
        %vm786 = vcmp.ge.s32.totalorder %v335, 1
        %vm787 = vcmp.lt.s32.totalorder %v334, 17
        %vm788 = vcmp.lt.s32.totalorder %v335, 17
        %vm789 = vmand %vm785, %vm787
        %vm790 = vmand %vm786, %vm788
        %v792 = vlaneseq
        %v793 = vshrl.u32 %v792, 7
        %v794 = vsub.s32 0, %v793
        %v795 = vrot.slane %v784, %v794
        %v796 = vlaneseq
        %v797 = vshrl.u32 %v796, 7
        %v798 = vsub.s32 1, %v797
        %v799 = vrot.slane %v784, %v798
        %v800 = vlaneseq
        %v801 = vshrl.u32 %v800, 7
        %v802 = vsub.s32 2, %v801
        %v803 = vrot.slane %v784, %v802
        %804 = vrot.lane.b32.xlu0 %v795, 126
        %v805 = vpop.permute.xlu0 %804
        %806 = vrot.lane.b32.xlu0 %v799, 126
        %v807 = vpop.permute.xlu0 %806
        %808 = vrot.lane.b32.xlu0 %v803, 126
        %v809 = vpop.permute.xlu0 %808
        %vm810 = vcmask 1031168
        %v811 = vsel %vm810, %v805, %v807
        %v812 = vsel %vm810, %v807, %v809
        %v815 = vsel %vm789, %v811, 0.0
        %v816 = vsel %vm790, %v812, 0.0
        %v817 = vadd.f32 %v655, %v815
        %v818 = vadd.f32 %v656, %v816
        %s819 = sld [smem:[#allocation3 + $0x3]]
        %v820 = vstv %s819
        %v821 = vmul.f32 %v820, %v342
        %v822 = vadd.f32 %v821, 0.0
        %s823 = sld [smem:[#allocation3 + $0xa]]
        %v824 = vstv %s823
        %v825 = vmul.f32 %v824, %v342
        %827 = vrot.lane.b32.xlu0 %v825, 112
        %v828 = vpop.permute.xlu0 %827
        %v829 = vrot.slane %v828, 1
        %v830 = vsel %vm349, %v828, %v829
        %v832 = vadd.f32 %v822, %v830
        %s833 = sld [smem:[#allocation3 + $0x11]]
        %v834 = vstv %s833
        %v835 = vmul.f32 %v834, %v342
        %837 = vrot.lane.b32.xlu0 %v835, 96
        %v838 = vpop.permute.xlu0 %837
        %v839 = vrot.slane %v838, 1
        %v840 = vsel %vm360, %v838, %v839
        %v842 = vadd.f32 %v832, %v840
        %s843 = sld [smem:[#allocation3 + $0x18]]
        %v844 = vstv %s843
        %v845 = vmul.f32 %v844, %v342
        %847 = vrot.lane.b32.xlu0 %v845, 80
        %v848 = vpop.permute.xlu0 %847
        %v849 = vrot.slane %v848, 1
        %v850 = vsel %vm371, %v848, %v849
        %v852 = vadd.f32 %v842, %v850
        %s853 = sld [smem:[#allocation3 + $0x1f]]
        %v854 = vstv %s853
        %v855 = vmul.f32 %v854, %v342
        %857 = vrot.lane.b32.xlu0 %v855, 64
        %v858 = vpop.permute.xlu0 %857
        %v859 = vrot.slane %v858, 1
        %v860 = vsel %vm382, %v858, %v859
        %v862 = vadd.f32 %v852, %v860
        %s863 = sld [smem:[#allocation3 + $0x26]]
        %v864 = vstv %s863
        %v865 = vmul.f32 %v864, %v342
        %867 = vrot.lane.b32.xlu0 %v865, 48
        %v868 = vpop.permute.xlu0 %867
        %v869 = vrot.slane %v868, 1
        %v870 = vsel %vm393, %v868, %v869
        %v872 = vadd.f32 %v862, %v870
        %s873 = sld [smem:[#allocation3 + $0x2d]]
        %v874 = vstv %s873
        %v875 = vmul.f32 %v874, %v342
        %877 = vrot.lane.b32.xlu0 %v875, 32
        %v878 = vpop.permute.xlu0 %877
        %v879 = vrot.slane %v878, 1
        %v880 = vsel %vm404, %v878, %v879
        %v882 = vadd.f32 %v872, %v880
        %s883 = sld [smem:[#allocation3 + $0x34]]
        %v884 = vstv %s883
        %v885 = vmul.f32 %v884, %v414
        %v886 = vadd.f32 %v882, %v885
        %s887 = sld [smem:[#allocation3 + $0x3b]]
        %v888 = vstv %s887
        %v889 = vmul.f32 %v888, %v414
        %891 = vrot.lane.b32.xlu0 %v889, 112
        %v892 = vpop.permute.xlu0 %891
        %v893 = vrot.slane %v892, 1
        %v894 = vsel %vm349, %v892, %v893
        %v896 = vadd.f32 %v886, %v894
        %s897 = sld [smem:[#allocation3 + $0x42]]
        %v898 = vstv %s897
        %v899 = vmul.f32 %v898, %v414
        %901 = vrot.lane.b32.xlu0 %v899, 96
        %v902 = vpop.permute.xlu0 %901
        %v903 = vrot.slane %v902, 1
        %v904 = vsel %vm360, %v902, %v903
        %v906 = vadd.f32 %v896, %v904
        %s907 = sld [smem:[#allocation3 + $0x49]]
        %v908 = vstv %s907
        %v909 = vmul.f32 %v908, %v414
        %911 = vrot.lane.b32.xlu0 %v909, 80
        %v912 = vpop.permute.xlu0 %911
        %v913 = vrot.slane %v912, 1
        %v914 = vsel %vm371, %v912, %v913
        %v916 = vadd.f32 %v906, %v914
        %s917 = sld [smem:[#allocation3 + $0x50]]
        %v918 = vstv %s917
        %v919 = vmul.f32 %v918, %v414
        %921 = vrot.lane.b32.xlu0 %v919, 64
        %v922 = vpop.permute.xlu0 %921
        %v923 = vrot.slane %v922, 1
        %v924 = vsel %vm382, %v922, %v923
        %v926 = vadd.f32 %v916, %v924
        %s927 = sld [smem:[#allocation3 + $0x57]]
        %v928 = vstv %s927
        %v929 = vmul.f32 %v928, %v414
        %931 = vrot.lane.b32.xlu0 %v929, 48
        %v932 = vpop.permute.xlu0 %931
        %v933 = vrot.slane %v932, 1
        %v934 = vsel %vm393, %v932, %v933
        %v936 = vadd.f32 %v926, %v934
        %s937 = sld [smem:[#allocation3 + $0x5e]]
        %v938 = vstv %s937
        %v939 = vmul.f32 %v938, %v414
        %941 = vrot.lane.b32.xlu0 %v939, 32
        %v942 = vpop.permute.xlu0 %941
        %v943 = vrot.slane %v942, 1
        %v944 = vsel %vm404, %v942, %v943
        %v946 = vadd.f32 %v936, %v944
        %v948 = vlaneseq
        %v949 = vshrl.u32 %v948, 7
        %v950 = vsub.s32 0, %v949
        %v951 = vrot.slane %v946, %v950
        %v952 = vlaneseq
        %v953 = vshrl.u32 %v952, 7
        %v954 = vsub.s32 1, %v953
        %v955 = vrot.slane %v946, %v954
        %v956 = vlaneseq
        %v957 = vshrl.u32 %v956, 7
        %v958 = vsub.s32 2, %v957
        %v959 = vrot.slane %v946, %v958
        %960 = vrot.lane.b32.xlu0 %v951, 125
        %v961 = vpop.permute.xlu0 %960
        %962 = vrot.lane.b32.xlu0 %v955, 125
        %v963 = vpop.permute.xlu0 %962
        %964 = vrot.lane.b32.xlu0 %v959, 125
        %v965 = vpop.permute.xlu0 %964
        %vm966 = vcmask 1022976
        %v967 = vsel %vm966, %v961, %v963
        %v968 = vsel %vm966, %v963, %v965
        %v971 = vadd.f32 %v817, %v967
        %v972 = vadd.f32 %v818, %v968
        %s973 = sld [smem:[#allocation3 + $0x4]]
        %v974 = vstv %s973
        %v975 = vmul.f32 %v974, %v342
        %v976 = vadd.f32 %v975, 0.0
        %s977 = sld [smem:[#allocation3 + $0xb]]
        %v978 = vstv %s977
        %v979 = vmul.f32 %v978, %v342
        %981 = vrot.lane.b32.xlu0 %v979, 112
        %v982 = vpop.permute.xlu0 %981
        %v983 = vrot.slane %v982, 1
        %v984 = vsel %vm349, %v982, %v983
        %v986 = vadd.f32 %v976, %v984
        %s987 = sld [smem:[#allocation3 + $0x12]]
        %v988 = vstv %s987
        %v989 = vmul.f32 %v988, %v342
        %991 = vrot.lane.b32.xlu0 %v989, 96
        %v992 = vpop.permute.xlu0 %991
        %v993 = vrot.slane %v992, 1
        %v994 = vsel %vm360, %v992, %v993
        %v996 = vadd.f32 %v986, %v994
        %s997 = sld [smem:[#allocation3 + $0x19]]
        %v998 = vstv %s997
        %v999 = vmul.f32 %v998, %v342
        %1001 = vrot.lane.b32.xlu0 %v999, 80
        %v1002 = vpop.permute.xlu0 %1001
        %v1003 = vrot.slane %v1002, 1
        %v1004 = vsel %vm371, %v1002, %v1003
        %v1006 = vadd.f32 %v996, %v1004
        %s1007 = sld [smem:[#allocation3 + $0x20]]
        %v1008 = vstv %s1007
        %v1009 = vmul.f32 %v1008, %v342
        %1011 = vrot.lane.b32.xlu0 %v1009, 64
        %v1012 = vpop.permute.xlu0 %1011
        %v1013 = vrot.slane %v1012, 1
        %v1014 = vsel %vm382, %v1012, %v1013
        %v1016 = vadd.f32 %v1006, %v1014
        %s1017 = sld [smem:[#allocation3 + $0x27]]
        %v1018 = vstv %s1017
        %v1019 = vmul.f32 %v1018, %v342
        %1021 = vrot.lane.b32.xlu0 %v1019, 48
        %v1022 = vpop.permute.xlu0 %1021
        %v1023 = vrot.slane %v1022, 1
        %v1024 = vsel %vm393, %v1022, %v1023
        %v1026 = vadd.f32 %v1016, %v1024
        %s1027 = sld [smem:[#allocation3 + $0x2e]]
        %v1028 = vstv %s1027
        %v1029 = vmul.f32 %v1028, %v342
        %1031 = vrot.lane.b32.xlu0 %v1029, 32
        %v1032 = vpop.permute.xlu0 %1031
        %v1033 = vrot.slane %v1032, 1
        %v1034 = vsel %vm404, %v1032, %v1033
        %v1036 = vadd.f32 %v1026, %v1034
        %s1037 = sld [smem:[#allocation3 + $0x35]]
        %v1038 = vstv %s1037
        %v1039 = vmul.f32 %v1038, %v414
        %v1040 = vadd.f32 %v1036, %v1039
        %s1041 = sld [smem:[#allocation3 + $0x3c]]
        %v1042 = vstv %s1041
        %v1043 = vmul.f32 %v1042, %v414
        %1045 = vrot.lane.b32.xlu0 %v1043, 112
        %v1046 = vpop.permute.xlu0 %1045
        %v1047 = vrot.slane %v1046, 1
        %v1048 = vsel %vm349, %v1046, %v1047
        %v1050 = vadd.f32 %v1040, %v1048
        %s1051 = sld [smem:[#allocation3 + $0x43]]
        %v1052 = vstv %s1051
        %v1053 = vmul.f32 %v1052, %v414
        %1055 = vrot.lane.b32.xlu0 %v1053, 96
        %v1056 = vpop.permute.xlu0 %1055
        %v1057 = vrot.slane %v1056, 1
        %v1058 = vsel %vm360, %v1056, %v1057
        %v1060 = vadd.f32 %v1050, %v1058
        %s1061 = sld [smem:[#allocation3 + $0x4a]]
        %v1062 = vstv %s1061
        %v1063 = vmul.f32 %v1062, %v414
        %1065 = vrot.lane.b32.xlu0 %v1063, 80
        %v1066 = vpop.permute.xlu0 %1065
        %v1067 = vrot.slane %v1066, 1
        %v1068 = vsel %vm371, %v1066, %v1067
        %v1070 = vadd.f32 %v1060, %v1068
        %s1071 = sld [smem:[#allocation3 + $0x51]]
        %v1072 = vstv %s1071
        %v1073 = vmul.f32 %v1072, %v414
        %1075 = vrot.lane.b32.xlu0 %v1073, 64
        %v1076 = vpop.permute.xlu0 %1075
        %v1077 = vrot.slane %v1076, 1
        %v1078 = vsel %vm382, %v1076, %v1077
        %v1080 = vadd.f32 %v1070, %v1078
        %s1081 = sld [smem:[#allocation3 + $0x58]]
        %v1082 = vstv %s1081
        %v1083 = vmul.f32 %v1082, %v414
        %1085 = vrot.lane.b32.xlu0 %v1083, 48
        %v1086 = vpop.permute.xlu0 %1085
        %v1087 = vrot.slane %v1086, 1
        %v1088 = vsel %vm393, %v1086, %v1087
        %v1090 = vadd.f32 %v1080, %v1088
        %s1091 = sld [smem:[#allocation3 + $0x5f]]
        %v1092 = vstv %s1091
        %v1093 = vmul.f32 %v1092, %v414
        %1095 = vrot.lane.b32.xlu0 %v1093, 32
        %v1096 = vpop.permute.xlu0 %1095
        %v1097 = vrot.slane %v1096, 1
        %v1098 = vsel %vm404, %v1096, %v1097
        %v1100 = vadd.f32 %v1090, %v1098
        %vm1101 = vcmp.ge.s32.totalorder %v334, 4294967295
        %vm1102 = vcmp.ge.s32.totalorder %v335, 4294967295
        %vm1103 = vcmp.lt.s32.totalorder %v334, 15
        %vm1104 = vcmp.lt.s32.totalorder %v335, 15
        %vm1105 = vmand %vm1101, %vm1103
        %vm1106 = vmand %vm1102, %vm1104
        %v1108 = vlaneseq
        %v1109 = vshrl.u32 %v1108, 7
        %v1110 = vsub.s32 0, %v1109
        %v1111 = vrot.slane %v1100, %v1110
        %v1112 = vlaneseq
        %v1113 = vshrl.u32 %v1112, 7
        %v1114 = vsub.s32 1, %v1113
        %v1115 = vrot.slane %v1100, %v1114
        %v1116 = vlaneseq
        %v1117 = vshrl.u32 %v1116, 7
        %v1118 = vsub.s32 2, %v1117
        %v1119 = vrot.slane %v1100, %v1118
        %1120 = vrot.lane.b32.xlu0 %v1111, 124
        %v1121 = vpop.permute.xlu0 %1120
        %1122 = vrot.lane.b32.xlu0 %v1115, 124
        %v1123 = vpop.permute.xlu0 %1122
        %1124 = vrot.lane.b32.xlu0 %v1119, 124
        %v1125 = vpop.permute.xlu0 %1124
        %vm1126 = vcmask 1014784
        %v1127 = vsel %vm1126, %v1121, %v1123
        %v1128 = vsel %vm1126, %v1123, %v1125
        %v1131 = vsel %vm1105, %v1127, 0.0
        %v1132 = vsel %vm1106, %v1128, 0.0
        %v1133 = vadd.f32 %v971, %v1131
        %v1134 = vadd.f32 %v972, %v1132
        %s1135 = sld [smem:[#allocation3 + $0x5]]
        %v1136 = vstv %s1135
        %v1137 = vmul.f32 %v1136, %v342
        %v1138 = vadd.f32 %v1137, 0.0
        %s1139 = sld [smem:[#allocation3 + $0xc]]
        %v1140 = vstv %s1139
        %v1141 = vmul.f32 %v1140, %v342
        %1143 = vrot.lane.b32.xlu0 %v1141, 112
        %v1144 = vpop.permute.xlu0 %1143
        %v1145 = vrot.slane %v1144, 1
        %v1146 = vsel %vm349, %v1144, %v1145
        %v1148 = vadd.f32 %v1138, %v1146
        %s1149 = sld [smem:[#allocation3 + $0x13]]
        %v1150 = vstv %s1149
        %v1151 = vmul.f32 %v1150, %v342
        %1153 = vrot.lane.b32.xlu0 %v1151, 96
        %v1154 = vpop.permute.xlu0 %1153
        %v1155 = vrot.slane %v1154, 1
        %v1156 = vsel %vm360, %v1154, %v1155
        %v1158 = vadd.f32 %v1148, %v1156
        %s1159 = sld [smem:[#allocation3 + $0x1a]]
        %v1160 = vstv %s1159
        %v1161 = vmul.f32 %v1160, %v342
        %1163 = vrot.lane.b32.xlu0 %v1161, 80
        %v1164 = vpop.permute.xlu0 %1163
        %v1165 = vrot.slane %v1164, 1
        %v1166 = vsel %vm371, %v1164, %v1165
        %v1168 = vadd.f32 %v1158, %v1166
        %s1169 = sld [smem:[#allocation3 + $0x21]]
        %v1170 = vstv %s1169
        %v1171 = vmul.f32 %v1170, %v342
        %1173 = vrot.lane.b32.xlu0 %v1171, 64
        %v1174 = vpop.permute.xlu0 %1173
        %v1175 = vrot.slane %v1174, 1
        %v1176 = vsel %vm382, %v1174, %v1175
        %v1178 = vadd.f32 %v1168, %v1176
        %s1179 = sld [smem:[#allocation3 + $0x28]]
        %v1180 = vstv %s1179
        %v1181 = vmul.f32 %v1180, %v342
        %1183 = vrot.lane.b32.xlu0 %v1181, 48
        %v1184 = vpop.permute.xlu0 %1183
        %v1185 = vrot.slane %v1184, 1
        %v1186 = vsel %vm393, %v1184, %v1185
        %v1188 = vadd.f32 %v1178, %v1186
        %s1189 = sld [smem:[#allocation3 + $0x2f]]
        %v1190 = vstv %s1189
        %v1191 = vmul.f32 %v1190, %v342
        %1193 = vrot.lane.b32.xlu0 %v1191, 32
        %v1194 = vpop.permute.xlu0 %1193
        %v1195 = vrot.slane %v1194, 1
        %v1196 = vsel %vm404, %v1194, %v1195
        %v1198 = vadd.f32 %v1188, %v1196
        %s1199 = sld [smem:[#allocation3 + $0x36]]
        %v1200 = vstv %s1199
        %v1201 = vmul.f32 %v1200, %v414
        %v1202 = vadd.f32 %v1198, %v1201
        %s1203 = sld [smem:[#allocation3 + $0x3d]]
        %v1204 = vstv %s1203
        %v1205 = vmul.f32 %v1204, %v414
        %1207 = vrot.lane.b32.xlu0 %v1205, 112
        %v1208 = vpop.permute.xlu0 %1207
        %v1209 = vrot.slane %v1208, 1
        %v1210 = vsel %vm349, %v1208, %v1209
        %v1212 = vadd.f32 %v1202, %v1210
        %s1213 = sld [smem:[#allocation3 + $0x44]]
        %v1214 = vstv %s1213
        %v1215 = vmul.f32 %v1214, %v414
        %1217 = vrot.lane.b32.xlu0 %v1215, 96
        %v1218 = vpop.permute.xlu0 %1217
        %v1219 = vrot.slane %v1218, 1
        %v1220 = vsel %vm360, %v1218, %v1219
        %v1222 = vadd.f32 %v1212, %v1220
        %s1223 = sld [smem:[#allocation3 + $0x4b]]
        %v1224 = vstv %s1223
        %v1225 = vmul.f32 %v1224, %v414
        %1227 = vrot.lane.b32.xlu0 %v1225, 80
        %v1228 = vpop.permute.xlu0 %1227
        %v1229 = vrot.slane %v1228, 1
        %v1230 = vsel %vm371, %v1228, %v1229
        %v1232 = vadd.f32 %v1222, %v1230
        %s1233 = sld [smem:[#allocation3 + $0x52]]
        %v1234 = vstv %s1233
        %v1235 = vmul.f32 %v1234, %v414
        %1237 = vrot.lane.b32.xlu0 %v1235, 64
        %v1238 = vpop.permute.xlu0 %1237
        %v1239 = vrot.slane %v1238, 1
        %v1240 = vsel %vm382, %v1238, %v1239
        %v1242 = vadd.f32 %v1232, %v1240
        %s1243 = sld [smem:[#allocation3 + $0x59]]
        %v1244 = vstv %s1243
        %v1245 = vmul.f32 %v1244, %v414
        %1247 = vrot.lane.b32.xlu0 %v1245, 48
        %v1248 = vpop.permute.xlu0 %1247
        %v1249 = vrot.slane %v1248, 1
        %v1250 = vsel %vm393, %v1248, %v1249
        %v1252 = vadd.f32 %v1242, %v1250
        %s1253 = sld [smem:[#allocation3 + $0x60]]
        %v1254 = vstv %s1253
        %v1255 = vmul.f32 %v1254, %v414
        %1257 = vrot.lane.b32.xlu0 %v1255, 32
        %v1258 = vpop.permute.xlu0 %1257
        %v1259 = vrot.slane %v1258, 1
        %v1260 = vsel %vm404, %v1258, %v1259
        %v1262 = vadd.f32 %v1252, %v1260
        %vm1263 = vcmp.ge.s32.totalorder %v334, 4294967294
        %vm1264 = vcmp.ge.s32.totalorder %v335, 4294967294
        %vm1265 = vcmp.lt.s32.totalorder %v334, 14
        %vm1266 = vcmp.lt.s32.totalorder %v335, 14
        %vm1267 = vmand %vm1263, %vm1265
        %vm1268 = vmand %vm1264, %vm1266
        %v1270 = vlaneseq
        %v1271 = vshrl.u32 %v1270, 7
        %v1272 = vsub.s32 0, %v1271
        %v1273 = vrot.slane %v1262, %v1272
        %v1274 = vlaneseq
        %v1275 = vshrl.u32 %v1274, 7
        %v1276 = vsub.s32 1, %v1275
        %v1277 = vrot.slane %v1262, %v1276
        %v1278 = vlaneseq
        %v1279 = vshrl.u32 %v1278, 7
        %v1280 = vsub.s32 2, %v1279
        %v1281 = vrot.slane %v1262, %v1280
        %1282 = vrot.lane.b32.xlu0 %v1273, 123
        %v1283 = vpop.permute.xlu0 %1282
        %1284 = vrot.lane.b32.xlu0 %v1277, 123
        %v1285 = vpop.permute.xlu0 %1284
        %1286 = vrot.lane.b32.xlu0 %v1281, 123
        %v1287 = vpop.permute.xlu0 %1286
        %vm1288 = vcmask 1006592
        %v1289 = vsel %vm1288, %v1283, %v1285
        %v1290 = vsel %vm1288, %v1285, %v1287
        %v1293 = vsel %vm1267, %v1289, 0.0
        %v1294 = vsel %vm1268, %v1290, 0.0
        %v1295 = vadd.f32 %v1133, %v1293
        %v1296 = vadd.f32 %v1134, %v1294
        %s1297 = sld [smem:[#allocation3 + $0x6]]
        %v1298 = vstv %s1297
        %v1299 = vmul.f32 %v1298, %v342
        %v1300 = vadd.f32 %v1299, 0.0
        %s1301 = sld [smem:[#allocation3 + $0xd]]
        %v1302 = vstv %s1301
        %v1303 = vmul.f32 %v1302, %v342
        %1305 = vrot.lane.b32.xlu0 %v1303, 112
        %v1306 = vpop.permute.xlu0 %1305
        %v1307 = vrot.slane %v1306, 1
        %v1308 = vsel %vm349, %v1306, %v1307
        %v1310 = vadd.f32 %v1300, %v1308
        %s1311 = sld [smem:[#allocation3 + $0x14]]
        %v1312 = vstv %s1311
        %v1313 = vmul.f32 %v1312, %v342
        %1315 = vrot.lane.b32.xlu0 %v1313, 96
        %v1316 = vpop.permute.xlu0 %1315
        %v1317 = vrot.slane %v1316, 1
        %v1318 = vsel %vm360, %v1316, %v1317
        %v1320 = vadd.f32 %v1310, %v1318
        %s1321 = sld [smem:[#allocation3 + $0x1b]]
        %v1322 = vstv %s1321
        %v1323 = vmul.f32 %v1322, %v342
        %1325 = vrot.lane.b32.xlu0 %v1323, 80
        %v1326 = vpop.permute.xlu0 %1325
        %v1327 = vrot.slane %v1326, 1
        %v1328 = vsel %vm371, %v1326, %v1327
        %v1330 = vadd.f32 %v1320, %v1328
        %s1331 = sld [smem:[#allocation3 + $0x22]]
        %v1332 = vstv %s1331
        %v1333 = vmul.f32 %v1332, %v342
        %1335 = vrot.lane.b32.xlu0 %v1333, 64
        %v1336 = vpop.permute.xlu0 %1335
        %v1337 = vrot.slane %v1336, 1
        %v1338 = vsel %vm382, %v1336, %v1337
        %v1340 = vadd.f32 %v1330, %v1338
        %s1341 = sld [smem:[#allocation3 + $0x29]]
        %v1342 = vstv %s1341
        %v1343 = vmul.f32 %v1342, %v342
        %1345 = vrot.lane.b32.xlu0 %v1343, 48
        %v1346 = vpop.permute.xlu0 %1345
        %v1347 = vrot.slane %v1346, 1
        %v1348 = vsel %vm393, %v1346, %v1347
        %v1350 = vadd.f32 %v1340, %v1348
        %s1351 = sld [smem:[#allocation3 + $0x30]]
        %v1352 = vstv %s1351
        %v1353 = vmul.f32 %v1352, %v342
        %1355 = vrot.lane.b32.xlu0 %v1353, 32
        %v1356 = vpop.permute.xlu0 %1355
        %v1357 = vrot.slane %v1356, 1
        %v1358 = vsel %vm404, %v1356, %v1357
        %v1360 = vadd.f32 %v1350, %v1358
        %s1361 = sld [smem:[#allocation3 + $0x37]]
        %v1362 = vstv %s1361
        %v1363 = vmul.f32 %v1362, %v414
        %v1364 = vadd.f32 %v1360, %v1363
        %s1365 = sld [smem:[#allocation3 + $0x3e]]
        %v1366 = vstv %s1365
        %v1367 = vmul.f32 %v1366, %v414
        %1369 = vrot.lane.b32.xlu0 %v1367, 112
        %v1370 = vpop.permute.xlu0 %1369
        %v1371 = vrot.slane %v1370, 1
        %v1372 = vsel %vm349, %v1370, %v1371
        %v1374 = vadd.f32 %v1364, %v1372
        %s1375 = sld [smem:[#allocation3 + $0x45]]
        %v1376 = vstv %s1375
        %v1377 = vmul.f32 %v1376, %v414
        %1379 = vrot.lane.b32.xlu0 %v1377, 96
        %v1380 = vpop.permute.xlu0 %1379
        %v1381 = vrot.slane %v1380, 1
        %v1382 = vsel %vm360, %v1380, %v1381
        %v1384 = vadd.f32 %v1374, %v1382
        %s1385 = sld [smem:[#allocation3 + $0x4c]]
        %v1386 = vstv %s1385
        %v1387 = vmul.f32 %v1386, %v414
        %1389 = vrot.lane.b32.xlu0 %v1387, 80
        %v1390 = vpop.permute.xlu0 %1389
        %v1391 = vrot.slane %v1390, 1
        %v1392 = vsel %vm371, %v1390, %v1391
        %v1394 = vadd.f32 %v1384, %v1392
        %s1395 = sld [smem:[#allocation3 + $0x53]]
        %v1396 = vstv %s1395
        %v1397 = vmul.f32 %v1396, %v414
        %1399 = vrot.lane.b32.xlu0 %v1397, 64
        %v1400 = vpop.permute.xlu0 %1399
        %v1401 = vrot.slane %v1400, 1
        %v1402 = vsel %vm382, %v1400, %v1401
        %v1404 = vadd.f32 %v1394, %v1402
        %s1405 = sld [smem:[#allocation3 + $0x5a]]
        %v1406 = vstv %s1405
        %v1407 = vmul.f32 %v1406, %v414
        %1409 = vrot.lane.b32.xlu0 %v1407, 48
        %v1410 = vpop.permute.xlu0 %1409
        %v1411 = vrot.slane %v1410, 1
        %v1412 = vsel %vm393, %v1410, %v1411
        %v1414 = vadd.f32 %v1404, %v1412
        %s1415 = sld [smem:[#allocation3 + $0x61]]
        %v1416 = vstv %s1415
        %v1417 = vmul.f32 %v1416, %v414
        %1419 = vrot.lane.b32.xlu0 %v1417, 32
        %v1420 = vpop.permute.xlu0 %1419
        %v1421 = vrot.slane %v1420, 1
        %v1422 = vsel %vm404, %v1420, %v1421
        %v1424 = vadd.f32 %v1414, %v1422
        %vm1425 = vcmp.ge.s32.totalorder %v334, 4294967293
        %vm1426 = vcmp.ge.s32.totalorder %v335, 4294967293
        %vm1427 = vcmp.lt.s32.totalorder %v334, 13
        %vm1428 = vcmp.lt.s32.totalorder %v335, 13
        %vm1429 = vmand %vm1425, %vm1427
        %vm1430 = vmand %vm1426, %vm1428
        %v1432 = vlaneseq
        %v1433 = vshrl.u32 %v1432, 7
        %v1434 = vsub.s32 0, %v1433
        %v1435 = vrot.slane %v1424, %v1434
        %v1436 = vlaneseq
        %v1437 = vshrl.u32 %v1436, 7
        %v1438 = vsub.s32 1, %v1437
        %v1439 = vrot.slane %v1424, %v1438
        %v1440 = vlaneseq
        %v1441 = vshrl.u32 %v1440, 7
        %v1442 = vsub.s32 2, %v1441
        %v1443 = vrot.slane %v1424, %v1442
        %1444 = vrot.lane.b32.xlu0 %v1435, 122
        %v1445 = vpop.permute.xlu0 %1444
        %1446 = vrot.lane.b32.xlu0 %v1439, 122
        %v1447 = vpop.permute.xlu0 %1446
        %1448 = vrot.lane.b32.xlu0 %v1443, 122
        %v1449 = vpop.permute.xlu0 %1448
        %vm1450 = vcmask 998400
        %v1451 = vsel %vm1450, %v1445, %v1447
        %v1452 = vsel %vm1450, %v1447, %v1449
        %v1455 = vsel %vm1429, %v1451, 0.0
        %v1456 = vsel %vm1430, %v1452, 0.0
        %v1457 = vadd.f32 %v1295, %v1455
        %v1458 = vadd.f32 %v1296, %v1456
        %s1459 = sld [smem:[#allocation8]]
        %v1460 = vstv %s1459
        %v1461 = vmul.f32 %v1457, %v1460
        %v1462 = vmul.f32 %v1458, %v1460
        %s1463 = sld [smem:[#allocation8 + $0x1]]
        %v1464 = vstv %s1463
        %v1465 = vadd.f32 %v1461, %v1464
        %v1466 = vadd.f32 %v1462, %v1464
        %v1467 = vsub.f32 0.0, %v1465
        %v1468 = vsub.f32 0.0, %v1466
        %v1469 = vmul.f32 %v1467, 1.442695
        %v1470 = vpow.pop %v1469
        %v1471 = vmul.f32 %v1468, 1.442695
        %v1472 = vpow.pop %v1471
        %v1473 = vadd.f32 %v1470, 1.0
        %v1474 = vadd.f32 %v1472, 1.0
        %v1475 = vrcp.pop %v1473
        %v1476 = vrcp.pop %v1474
        %v1477 = vld [vmem:[%s188] sm:$0xff]
        %v1478 = vlaneseq
        %v1479 = vshrl.u32 %v1478, 7
        %v1480 = vsub.s32 0, %v1479
        %v1481 = vrot.slane %v1475, %v1480
        %v1482 = vlaneseq
        %v1483 = vshrl.u32 %v1482, 7
        %v1484 = vsub.s32 0, %v1483
        %v1485 = vrot.slane %v1476, %v1484
        %v1488 = vcombine.low %v1481, %v1485
        %v1490 = vmul.f32 %v1477, %v1488
        %1491 = vst [vmem:[%s211] sm:$0xff] %v1490
        %s1492 = sand.u32 %s98, 1
        %s1493 = scalar_lea.sflag [#allocation5], %s1492
        %s1494 = sand.u32 %s98, 1
        %s1495 = smul.addr %s1494, 8
        %s1496 = scalar_lea.vmem [#allocation10], %s1495
        // Predicated region
        $region45: #{tpu_custom_call.1} parent=31 // pred_check
          %p1497 = pneg %p108
        $region46: #{tpu_custom_call.1} parent=31 // pred_check_branch
          %1499 = sbr.rel (%p1497) target = $region48
        $region47: #{tpu_custom_call.1} parent=31 // pred_region
          %s1501 = ssub.s32 128, 128
          %1502 = vsyncadd %s1493, %s1501
          %s1503 = smul.addr %s22, 2
          %s1504 = smul.addr %s1503, 64
          %s1505 = scalar_lea.hbm %s3, %s1504
          %s1507 = sshll.u32 %s1496, 4
          %s1508 = int_to_ptr.vmem [resolvable:$true] %s1507
          %1510 = dma.vmem_to_hbm [thread:$0]  %s1508, 128, %s1505, %s1493
        $region48: #{tpu_custom_call.1} parent=31 // pred_fallthru
          _
      $region32: #{tpu_custom_call.1} parent=5 // pred_fallthru
        _
      %p1511 = scmp.le.s32.totalorder 2, %s17
      // Predicated region
      $region49: #{tpu_custom_call.1} parent=5 // pred_check
        %p1512 = pneg %p1511
      $region50: #{tpu_custom_call.1} parent=5 // pred_check_branch
        %1514 = sbr.rel (%p1512) target = $region52
      $region51: #{tpu_custom_call.1} parent=5 // pred_region
        %s1515 = ssub.s32 %s17, 2
        // Predicated region
        $region53: #{tpu_custom_call.1} parent=51 // pred_check
          %p1516 = pneg %p114
        $region54: #{tpu_custom_call.1} parent=51 // pred_check_branch
          %1518 = sbr.rel (%p1516) target = $region56
        $region55: #{tpu_custom_call.1} parent=51 // pred_region
          %s1519 = sand.u32 %s99, 1
          %s1520 = scalar_lea.sflag [#allocation5], %s1519
          %s1521 = sand.u32 %s99, 1
          %s1522 = smul.addr %s1521, 8
          %s1523 = scalar_lea.vmem [#allocation10], %s1522
          %1524 = dma.done %s1520, 128
        $region56: #{tpu_custom_call.1} parent=51 // pred_fallthru
          _
      $region52: #{tpu_custom_call.1} parent=5 // pred_fallthru
        _
    $region6: #{tpu_custom_call.1} parent=1 // loop_footer
      %s21 = sadd.s32 1, %s17
    $region7: #{tpu_custom_call.1} parent=1 // loop_footer_branch
      %16 = sbr.rel target = $region3
    $region8: #{tpu_custom_call.1} parent=1 // loop_exit
      _
    %1525 = vsyncpa [#allocation4], 1
    %s1526 = scalar_lea.sflag [#allocation4], 1
    %1527 = vsyncpa %s1526, 1
    %1528 = vsyncpa [#allocation5], 1
    %s1529 = scalar_lea.sflag [#allocation5], 1
    %1530 = vsyncpa %s1529, 1
    %1531 = vsyncpa [#allocation6], 1
    %s1532 = scalar_lea.sflag [#allocation6], 1
    %1533 = vsyncpa %s1532, 1
    %1534 = vsyncpa [#allocation7], 1
    %s1535 = scalar_lea.sflag [#allocation7], 1
    %1536 = vsyncpa %s1535, 1

</llo_original>
